<compile_context>
chip_gen: v5e
topology: v5e:2x2
jax: 0.10.0
libtpu: 0.0.40
codegen_flags: <defaults>
</compile_context>

<pallas_src>
import jax
import jax.numpy as jnp
from jax.experimental import pallas as pl
from jax.experimental.pallas import tpu as pltpu  # noqa: F401

# ---------------- configuration ------------------------------------------------
B = 2          # batch
C_IN = 4       # input channels
H = W = 16     # spatial
C_FEAT = 32    # backbone output channels (f = backbone(x).squeeze(-1).squeeze(-1))
HID = 32       # per-task hidden ('feature')
N_CLS = 8      # per-task output classes
TASKS = ["task_a", "task_b", "task_c"]
T = len(TASKS)

FEAT_END = C_FEAT + T * HID            # 128  (end of the feature section)
OUT_END = FEAT_END + T * N_CLS         # 152  (end of the output section)
SLAB_W = 256                           # lane-dense slab width (multiple of 128)


# ---------------- fused kernel: conv+ReLU+GAP + all task heads ------------------
def fused_model_kernel(x_ref, cw_ref, cb_ref, w1_ref, b1_ref, w2_ref, b2_ref,
                       slab_ref):
    # x_ref : [B, H+2, W+2, Cin] f32 (pre-padded, NHWC)
    # cw_ref: [9*Cin, Cout]      bf16   cb_ref: [1, Cout]      f32
    # w1_ref: [Cout, T*HID]      bf16   b1_ref: [1, T*HID]     f32   (stacked heads)
    # w2_ref: [T*HID, T*N_CLS]   bf16   b2_ref: [1, T*N_CLS]   f32   (block-diagonal)
    # slab_ref: [B, SLAB_W] f32  =  [ f | feat_0..T-1 | out_0..T-1 | zero pad ]
    Bb, Hp, Wp, Cin = x_ref.shape
    Hh, Ww = Hp - 2, Wp - 2
    Cout = cw_ref.shape[-1]

    # ---- conv3x3(pad=1) as a single im2col matmul on the MXU -------------
    taps = []
    for kh in range(3):
        for kw in range(3):
            taps.append(
                x_ref[:, kh:kh + Hh, kw:kw + Ww, :].reshape(Bb * Hh * Ww, Cin))
    patch = jnp.concatenate(taps, axis=-1)                    # [B*H*W, 9*Cin] f32
    conv = jnp.dot(patch.astype(jnp.bfloat16), cw_ref[...],
                   preferred_element_type=jnp.float32)        # [B*H*W, Cout] f32
    conv = jnp.maximum(conv + cb_ref[...], 0.0)               # bias + ReLU (f32)
    # global average pool over spatial == .squeeze(-1).squeeze(-1) of 1x1 map
    f = jnp.mean(conv.reshape(Bb, Hh * Ww, Cout), axis=1)     # [B, Cout] f32

    # ---- all task heads as two matmuls (stacked / block-diagonal) --------
    h_all = jnp.dot(f.astype(jnp.bfloat16), w1_ref[...],
                    preferred_element_type=jnp.float32)       # [B, T*HID]
    h_all = jnp.maximum(h_all + b1_ref[...], 0.0)             # 'feature's (f32)
    o_all = jnp.dot(h_all.astype(jnp.bfloat16), w2_ref[...],
                    preferred_element_type=jnp.float32) + b2_ref[...]  # 'output's

    pad_w = slab_ref.shape[-1] - (Cout + h_all.shape[-1] + o_all.shape[-1])
    slab_ref[...] = jnp.concatenate(
        [f, h_all, o_all, jnp.zeros((Bb, pad_w), jnp.float32)], axis=-1)


# ---------------- Model.forward equivalent --------------------------------------
def model_forward(x_nchw, params):
    # layout: NCHW (PyTorch) -> NHWC (lane-dense channels) + halo pad for 3x3.
    x_nhwc = jnp.transpose(x_nchw, (0, 2, 3, 1))
    x_pad = jnp.pad(x_nhwc, ((0, 0), (1, 1), (1, 1), (0, 0)))

    # MXU operands in bf16 (halves weight DMA, native MXU dtype); biases stay f32.
    cw = params["conv_w"].reshape(9 * C_IN, C_FEAT).astype(jnp.bfloat16)

    # Stack the T first-layer heads side by side:  [C_FEAT, T*HID]
    w1_all = jnp.transpose(params["w1"], (1, 0, 2)).reshape(C_FEAT, T * HID)
    w1_all = w1_all.astype(jnp.bfloat16)
    b1_all = params["b1"].reshape(1, T * HID)

    # Block-diagonal second layer:  [T*HID, T*N_CLS]  (zero blocks are exact)
    w2_bd = jnp.zeros((T * HID, T * N_CLS), jnp.float32)
    for i in range(T):
        w2_bd = w2_bd.at[i * HID:(i + 1) * HID,
                         i * N_CLS:(i + 1) * N_CLS].set(params["w2"][i])
    w2_bd = w2_bd.astype(jnp.bfloat16)
    b2_all = params["b2"].reshape(1, T * N_CLS)

    slab = pl.pallas_call(
        fused_model_kernel,
        out_shape=jax.ShapeDtypeStruct((B, SLAB_W), jnp.float32),
    )(x_pad, cw, params["conv_b"], w1_all, b1_all, w2_bd, b2_all)

    f = slab[:, :C_FEAT]
    features = {"cross_task": f}
    outputs = {}
    for i, task in enumerate(TASKS):
        features[task] = slab[:, C_FEAT + i * HID: C_FEAT + (i + 1) * HID]
        outputs[task] = slab[:, FEAT_END + i * N_CLS: FEAT_END + (i + 1) * N_CLS]
    return {"output": outputs, "feature": features}


# ---------------- pure-JAX reference (for numerical sanity) ---------------------
def reference_forward(x_nchw, params):
    x = jnp.transpose(x_nchw, (0, 2, 3, 1))
    y = jax.lax.conv_general_dilated(
        x, params["conv_w"], window_strides=(1, 1), padding="SAME",
        dimension_numbers=("NHWC", "HWIO", "NHWC"))
    y = jnp.maximum(y + params["conv_b"][0], 0.0)
    f = jnp.mean(y, axis=(1, 2))
    features = {"cross_task": f}
    outputs = {}
    for i, task in enumerate(TASKS):
        h = jnp.maximum(f @ params["w1"][i] + params["b1"][i], 0.0)
        features[task] = h
        outputs[task] = h @ params["w2"][i] + params["b2"][i]
    return {"output": outputs, "feature": features}


# ---------------- deterministic parameter init ----------------------------------
def init_params(key):
    ks = jax.random.split(key, 5)
    scale = 0.1
    return {
        # conv weight in HWIO (NHWC conv layout)
        "conv_w": scale * jax.random.normal(ks[0], (3, 3, C_IN, C_FEAT), jnp.float32),
        "conv_b": scale * jax.random.normal(ks[1], (1, C_FEAT), jnp.float32),
        # per-task head weights stacked over the task axis
        "w1": scale * jax.random.normal(ks[2], (T, C_FEAT, HID), jnp.float32),
        "b1": jnp.zeros((T, 1, HID), jnp.float32),
        "w2": scale * jax.random.normal(ks[3], (T, HID, N_CLS), jnp.float32),
        "b2": jnp.zeros((T, 1, N_CLS), jnp.float32),
    }


if __name__ == "__main__":
    key = jax.random.PRNGKey(0)
    kx, kp = jax.random.split(key)
    x = jax.random.normal(kx, (B, C_IN, H, W), jnp.float32)   # NCHW like PyTorch
    params = init_params(kp)

    result = jax.jit(model_forward)(x, params)
    jax.block_until_ready(result)

    # structural checks
    assert result["feature"]["cross_task"].shape == (B, C_FEAT)
    for task in TASKS:
        assert result["output"][task].shape == (B, N_CLS)
        assert result["feature"][task].shape == (B, HID)

    # numerical sanity vs pure-JAX reference (loose tol: bf16 MXU operands)
    ref = reference_forward(x, params)
    tol = 2e-2
    assert jnp.max(jnp.abs(result["feature"]["cross_task"]
                           - ref["feature"]["cross_task"])) < tol
    for task in TASKS:
        assert jnp.max(jnp.abs(result["output"][task] - ref["output"][task])) < tol
        assert jnp.max(jnp.abs(result["feature"][task] - ref["feature"][task])) < tol

    print("KERNEL_OK")
</pallas_src>

<mosaic_0001>
module attributes {stable_mosaic.version = 11 : i64} {
  func.func @fused_model_kernel(%arg0: memref<2x18x18x4xf32, #tpu.memory_space<vmem>>, %arg1: memref<36x32xbf16, #tpu.memory_space<vmem>>, %arg2: memref<1x32xf32, #tpu.memory_space<vmem>>, %arg3: memref<32x96xbf16, #tpu.memory_space<vmem>>, %arg4: memref<1x96xf32, #tpu.memory_space<vmem>>, %arg5: memref<96x24xbf16, #tpu.memory_space<vmem>>, %arg6: memref<1x24xf32, #tpu.memory_space<vmem>>, %arg7: memref<2x256xf32, #tpu.memory_space<vmem>>) attributes {dimension_semantics = [], scalar_prefetch = 0 : i64, scratch_operands = 0 : i64, tpu.core_type = #tpu.core_type<tc>} {
    %c0 = arith.constant 0 : index
    %c0_0 = arith.constant 0 : index
    %c0_1 = arith.constant 0 : index
    %c0_2 = arith.constant 0 : index
    %0 = vector.load %arg0[%c0, %c0_0, %c0_1, %c0_2] : memref<2x18x18x4xf32, #tpu.memory_space<vmem>>, vector<2x16x16x4xf32>
    %1 = vector.shape_cast %0 : vector<2x16x16x4xf32> to vector<512x4xf32>
    %c0_3 = arith.constant 0 : index
    %c0_4 = arith.constant 0 : index
    %c1 = arith.constant 1 : index
    %c0_5 = arith.constant 0 : index
    %2 = vector.load %arg0[%c0_3, %c0_4, %c1, %c0_5] : memref<2x18x18x4xf32, #tpu.memory_space<vmem>>, vector<2x16x16x4xf32>
    %3 = vector.shape_cast %2 : vector<2x16x16x4xf32> to vector<512x4xf32>
    %c0_6 = arith.constant 0 : index
    %c0_7 = arith.constant 0 : index
    %c2 = arith.constant 2 : index
    %c0_8 = arith.constant 0 : index
    %4 = vector.load %arg0[%c0_6, %c0_7, %c2, %c0_8] : memref<2x18x18x4xf32, #tpu.memory_space<vmem>>, vector<2x16x16x4xf32>
    %5 = vector.shape_cast %4 : vector<2x16x16x4xf32> to vector<512x4xf32>
    %c0_9 = arith.constant 0 : index
    %c1_10 = arith.constant 1 : index
    %c0_11 = arith.constant 0 : index
    %c0_12 = arith.constant 0 : index
    %6 = vector.load %arg0[%c0_9, %c1_10, %c0_11, %c0_12] : memref<2x18x18x4xf32, #tpu.memory_space<vmem>>, vector<2x16x16x4xf32>
    %7 = vector.shape_cast %6 : vector<2x16x16x4xf32> to vector<512x4xf32>
    %c0_13 = arith.constant 0 : index
    %c1_14 = arith.constant 1 : index
    %c1_15 = arith.constant 1 : index
    %c0_16 = arith.constant 0 : index
    %8 = vector.load %arg0[%c0_13, %c1_14, %c1_15, %c0_16] : memref<2x18x18x4xf32, #tpu.memory_space<vmem>>, vector<2x16x16x4xf32>
    %9 = vector.shape_cast %8 : vector<2x16x16x4xf32> to vector<512x4xf32>
    %c0_17 = arith.constant 0 : index
    %c1_18 = arith.constant 1 : index
    %c2_19 = arith.constant 2 : index
    %c0_20 = arith.constant 0 : index
    %10 = vector.load %arg0[%c0_17, %c1_18, %c2_19, %c0_20] : memref<2x18x18x4xf32, #tpu.memory_space<vmem>>, vector<2x16x16x4xf32>
    %11 = vector.shape_cast %10 : vector<2x16x16x4xf32> to vector<512x4xf32>
    %c0_21 = arith.constant 0 : index
    %c2_22 = arith.constant 2 : index
    %c0_23 = arith.constant 0 : index
    %c0_24 = arith.constant 0 : index
    %12 = vector.load %arg0[%c0_21, %c2_22, %c0_23, %c0_24] : memref<2x18x18x4xf32, #tpu.memory_space<vmem>>, vector<2x16x16x4xf32>
    %13 = vector.shape_cast %12 : vector<2x16x16x4xf32> to vector<512x4xf32>
    %c0_25 = arith.constant 0 : index
    %c2_26 = arith.constant 2 : index
    %c1_27 = arith.constant 1 : index
    %c0_28 = arith.constant 0 : index
    %14 = vector.load %arg0[%c0_25, %c2_26, %c1_27, %c0_28] : memref<2x18x18x4xf32, #tpu.memory_space<vmem>>, vector<2x16x16x4xf32>
    %15 = vector.shape_cast %14 : vector<2x16x16x4xf32> to vector<512x4xf32>
    %c0_29 = arith.constant 0 : index
    %c2_30 = arith.constant 2 : index
    %c2_31 = arith.constant 2 : index
    %c0_32 = arith.constant 0 : index
    %16 = vector.load %arg0[%c0_29, %c2_30, %c2_31, %c0_32] : memref<2x18x18x4xf32, #tpu.memory_space<vmem>>, vector<2x16x16x4xf32>
    %17 = vector.shape_cast %16 : vector<2x16x16x4xf32> to vector<512x4xf32>
    %18 = tpu.concatenate %1, %3, %5, %7, %9, %11, %13, %15, %17 in 1 : vector<512x4xf32>, vector<512x4xf32>, vector<512x4xf32>, vector<512x4xf32>, vector<512x4xf32>, vector<512x4xf32>, vector<512x4xf32>, vector<512x4xf32>, vector<512x4xf32> -> vector<512x36xf32>
    %19 = arith.truncf %18 : vector<512x36xf32> to vector<512x36xbf16>
    %c0_33 = arith.constant 0 : index
    %c0_34 = arith.constant 0 : index
    %20 = vector.load %arg1[%c0_33, %c0_34] : memref<36x32xbf16, #tpu.memory_space<vmem>>, vector<36x32xbf16>
    %cst = arith.constant dense<0.000000e+00> : vector<512x32xf32>
    %21 = tpu.matmul %19, %20, %cst {dimension_numbers = #tpu.dot_dimension_numbers<[1], [0], [0], [1], [0, 0, 1, 1], [], []>} : vector<512x36xbf16>, vector<36x32xbf16>, vector<512x32xf32> -> vector<512x32xf32>
    %c0_35 = arith.constant 0 : index
    %c0_36 = arith.constant 0 : index
    %22 = vector.load %arg2[%c0_35, %c0_36] : memref<1x32xf32, #tpu.memory_space<vmem>>, vector<1x32xf32>
    %23 = vector.broadcast %22 : vector<1x32xf32> to vector<512x32xf32>
    %24 = arith.addf %21, %23 : vector<512x32xf32>
    %cst_37 = arith.constant 0.000000e+00 : f32
    %25 = vector.broadcast %cst_37 : f32 to vector<512x32xf32>
    %26 = arith.maximumf %24, %25 : vector<512x32xf32>
    %27 = vector.shape_cast %26 : vector<512x32xf32> to vector<2x256x32xf32>
    %cst_38 = arith.constant dense<0.000000e+00> : vector<2x32xf32>
    %28 = vector.multi_reduction <add>, %27, %cst_38 [1] : vector<2x256x32xf32> to vector<2x32xf32>
    %cst_39 = arith.constant 2.560000e+02 : f32
    %29 = vector.broadcast %cst_39 : f32 to vector<2x32xf32>
    %30 = arith.divf %28, %29 : vector<2x32xf32>
    %31 = arith.truncf %30 : vector<2x32xf32> to vector<2x32xbf16>
    %c0_40 = arith.constant 0 : index
    %c0_41 = arith.constant 0 : index
    %32 = vector.load %arg3[%c0_40, %c0_41] : memref<32x96xbf16, #tpu.memory_space<vmem>>, vector<32x96xbf16>
    %cst_42 = arith.constant dense<0.000000e+00> : vector<2x96xf32>
    %33 = tpu.matmul %31, %32, %cst_42 {dimension_numbers = #tpu.dot_dimension_numbers<[1], [0], [0], [1], [0, 0, 1, 1], [], []>} : vector<2x32xbf16>, vector<32x96xbf16>, vector<2x96xf32> -> vector<2x96xf32>
    %c0_43 = arith.constant 0 : index
    %c0_44 = arith.constant 0 : index
    %34 = vector.load %arg4[%c0_43, %c0_44] : memref<1x96xf32, #tpu.memory_space<vmem>>, vector<1x96xf32>
    %35 = vector.broadcast %34 : vector<1x96xf32> to vector<2x96xf32>
    %36 = arith.addf %33, %35 : vector<2x96xf32>
    %cst_45 = arith.constant 0.000000e+00 : f32
    %37 = vector.broadcast %cst_45 : f32 to vector<2x96xf32>
    %38 = arith.maximumf %36, %37 : vector<2x96xf32>
    %39 = arith.truncf %38 : vector<2x96xf32> to vector<2x96xbf16>
    %c0_46 = arith.constant 0 : index
    %c0_47 = arith.constant 0 : index
    %40 = vector.load %arg5[%c0_46, %c0_47] : memref<96x24xbf16, #tpu.memory_space<vmem>>, vector<96x24xbf16>
    %cst_48 = arith.constant dense<0.000000e+00> : vector<2x24xf32>
    %41 = tpu.matmul %39, %40, %cst_48 {dimension_numbers = #tpu.dot_dimension_numbers<[1], [0], [0], [1], [0, 0, 1, 1], [], []>} : vector<2x96xbf16>, vector<96x24xbf16>, vector<2x24xf32> -> vector<2x24xf32>
    %c0_49 = arith.constant 0 : index
    %c0_50 = arith.constant 0 : index
    %42 = vector.load %arg6[%c0_49, %c0_50] : memref<1x24xf32, #tpu.memory_space<vmem>>, vector<1x24xf32>
    %43 = vector.broadcast %42 : vector<1x24xf32> to vector<2x24xf32>
    %44 = arith.addf %41, %43 : vector<2x24xf32>
    %cst_51 = arith.constant 0.000000e+00 : f32
    %45 = vector.broadcast %cst_51 : f32 to vector<2x104xf32>
    %46 = tpu.concatenate %30, %38, %44, %45 in 1 : vector<2x32xf32>, vector<2x96xf32>, vector<2x24xf32>, vector<2x104xf32> -> vector<2x256xf32>
    %c0_52 = arith.constant 0 : index
    %c0_53 = arith.constant 0 : index
    %47 = vector.load %arg7[%c0_52, %c0_53] : memref<2x256xf32, #tpu.memory_space<vmem>>, vector<2x256xf32>
    tpu.vector_store %arg7[%c0_52, %c0_53], %46 {strides = array<i32>} : memref<2x256xf32, #tpu.memory_space<vmem>>, vector<2x256xf32>,
    return
  }
}

</mosaic_0001>

<llo_original>
// kernel: model_forward.1
$region0: #{model_forward.1}
  #allocation0 [shape = 'u32[]', space=smem, size = 0x4, offset = 0x4, fixed_abs, tag = 'smem constant byte address 0x4 - core index']
  #allocation1 [shape = 'u32[72,128]{1,0:T(1,128)}', space=vmem, size = 0x9000, scoped, tag = 'internal scratch']
  %s0 = inlined_call_operand.vmem [shape: f32[2,18,18,4], index: 0, kind: input, shape index: {}]
  %s1 = inlined_call_operand.vmem [shape: bf16[36,32], index: 1, kind: input, shape index: {}]
  %s2 = inlined_call_operand.vmem [shape: f32[1,32], index: 2, kind: input, shape index: {}]
  %s3 = inlined_call_operand.vmem [shape: bf16[32,96], index: 3, kind: input, shape index: {}]
  %s4 = inlined_call_operand.vmem [shape: f32[1,96], index: 4, kind: input, shape index: {}]
  %s5 = inlined_call_operand.vmem [shape: bf16[96,24], index: 5, kind: input, shape index: {}]
  %s6 = inlined_call_operand.vmem [shape: f32[1,24], index: 6, kind: input, shape index: {}]
  %s7 = inlined_call_operand.vmem [shape: f32[2,256], index: 7, kind: output, shape index: {}]
  %s8 = sld [smem:[#allocation0]]
  $region38: #{model_forward.1} parent=0
    _
  %s10 = ssub.s32 1, %s8
  %s11 = scalar_select 0, %s10, %s8
  // Predicated region
  $region2: #{model_forward.1} parent=0 // pred_check
    _
  $region3: #{model_forward.1} parent=0 // pred_check_branch
    %13 = sbr.rel (0) target = $region5
  $region4: #{model_forward.1} parent=0 // pred_region
    _
  $region5: #{model_forward.1} parent=0 // pred_fallthru
    _
  // Predicated region
  $region6: #{model_forward.1} parent=0 // pred_check
    _
  $region7: #{model_forward.1} parent=0 // pred_check_branch
    %15 = sbr.rel (0) target = $region9
  $region8: #{model_forward.1} parent=0 // pred_region
    _
  $region9: #{model_forward.1} parent=0 // pred_fallthru
    _
  // Predicated region
  $region10: #{model_forward.1} parent=0 // pred_check
    _
  $region11: #{model_forward.1} parent=0 // pred_check_branch
    %17 = sbr.rel (0) target = $region13
  $region12: #{model_forward.1} parent=0 // pred_region
    _
  $region13: #{model_forward.1} parent=0 // pred_fallthru
    _
  // Predicated region
  $region14: #{model_forward.1} parent=0 // pred_check
    _
  $region15: #{model_forward.1} parent=0 // pred_check_branch
    %19 = sbr.rel (0) target = $region17
  $region16: #{model_forward.1} parent=0 // pred_region
    _
  $region17: #{model_forward.1} parent=0 // pred_fallthru
    _
  // Predicated region
  $region18: #{model_forward.1} parent=0 // pred_check
    _
  $region19: #{model_forward.1} parent=0 // pred_check_branch
    %21 = sbr.rel (0) target = $region21
  $region20: #{model_forward.1} parent=0 // pred_region
    _
  $region21: #{model_forward.1} parent=0 // pred_fallthru
    _
  // Predicated region
  $region22: #{model_forward.1} parent=0 // pred_check
    _
  $region23: #{model_forward.1} parent=0 // pred_check_branch
    %23 = sbr.rel (0) target = $region25
  $region24: #{model_forward.1} parent=0 // pred_region
    _
  $region25: #{model_forward.1} parent=0 // pred_fallthru
    _
  // Predicated region
  $region26: #{model_forward.1} parent=0 // pred_check
    _
  $region27: #{model_forward.1} parent=0 // pred_check_branch
    %25 = sbr.rel (0) target = $region29
  $region28: #{model_forward.1} parent=0 // pred_region
    _
  $region29: #{model_forward.1} parent=0 // pred_fallthru
    _
  %v27 = vld [vmem:[%s0] sm:$0xff]
  %v28 = vld [vmem:[%s0 + $0x8] sm:$0xff]
  %v29 = vld [vmem:[%s0 + $0x18] sm:$0xff]
  %v30 = vld [vmem:[%s0 + $0x20] sm:$0xff]
  %v31 = vld [vmem:[%s0 + $0x30] sm:$0xff]
  %v32 = vld [vmem:[%s0 + $0x38] sm:$0xff]
  %v33 = vld [vmem:[%s0 + $0x48] sm:$0xff]
  %v34 = vld [vmem:[%s0 + $0x50] sm:$0xff]
  %v35 = vld [vmem:[%s0 + $0x60] sm:$0xff]
  %v36 = vld [vmem:[%s0 + $0x68] sm:$0xff]
  %v37 = vld [vmem:[%s0 + $0x78] sm:$0xff]
  %v38 = vld [vmem:[%s0 + $0x80] sm:$0xff]
  %v39 = vld [vmem:[%s0 + $0x90] sm:$0xff]
  %v40 = vld [vmem:[%s0 + $0x98] sm:$0xff]
  %v41 = vld [vmem:[%s0 + $0xa8] sm:$0xff]
  %v42 = vld [vmem:[%s0 + $0xb0] sm:$0xff]
  %v43 = vld [vmem:[%s0 + $0xc0] sm:$0xff]
  %v44 = vld [vmem:[%s0 + $0xc8] sm:$0xff]
  %v45 = vld [vmem:[%s0 + $0xd8] sm:$0xff]
  %v46 = vld [vmem:[%s0 + $0xe0] sm:$0xff]
  %v47 = vld [vmem:[%s0 + $0xf0] sm:$0xff]
  %v48 = vld [vmem:[%s0 + $0xf8] sm:$0xff]
  %v49 = vld [vmem:[%s0 + $0x108] sm:$0xff]
  %v50 = vld [vmem:[%s0 + $0x110] sm:$0xff]
  %v51 = vld [vmem:[%s0 + $0x120] sm:$0xff]
  %v52 = vld [vmem:[%s0 + $0x128] sm:$0xff]
  %v53 = vld [vmem:[%s0 + $0x138] sm:$0xff]
  %v54 = vld [vmem:[%s0 + $0x140] sm:$0xff]
  %v55 = vld [vmem:[%s0 + $0x150] sm:$0xff]
  %v56 = vld [vmem:[%s0 + $0x158] sm:$0xff]
  %v57 = vld [vmem:[%s0 + $0x168] sm:$0xff]
  %v58 = vld [vmem:[%s0 + $0x170] sm:$0xff]
  %v59 = vld [vmem:[%s0 + $0x1b0] sm:$0xff]
  %v60 = vld [vmem:[%s0 + $0x1b8] sm:$0xff]
  %v61 = vld [vmem:[%s0 + $0x1c8] sm:$0xff]
  %v62 = vld [vmem:[%s0 + $0x1d0] sm:$0xff]
  %v63 = vld [vmem:[%s0 + $0x1e0] sm:$0xff]
  %v64 = vld [vmem:[%s0 + $0x1e8] sm:$0xff]
  %v65 = vld [vmem:[%s0 + $0x1f8] sm:$0xff]
  %v66 = vld [vmem:[%s0 + $0x200] sm:$0xff]
  %v67 = vld [vmem:[%s0 + $0x210] sm:$0xff]
  %v68 = vld [vmem:[%s0 + $0x218] sm:$0xff]
  %v69 = vld [vmem:[%s0 + $0x228] sm:$0xff]
  %v70 = vld [vmem:[%s0 + $0x230] sm:$0xff]
  %v71 = vld [vmem:[%s0 + $0x240] sm:$0xff]
  %v72 = vld [vmem:[%s0 + $0x248] sm:$0xff]
  %v73 = vld [vmem:[%s0 + $0x258] sm:$0xff]
  %v74 = vld [vmem:[%s0 + $0x260] sm:$0xff]
  %v75 = vld [vmem:[%s0 + $0x270] sm:$0xff]
  %v76 = vld [vmem:[%s0 + $0x278] sm:$0xff]
  %v77 = vld [vmem:[%s0 + $0x288] sm:$0xff]
  %v78 = vld [vmem:[%s0 + $0x290] sm:$0xff]
  %v79 = vld [vmem:[%s0 + $0x2a0] sm:$0xff]
  %v80 = vld [vmem:[%s0 + $0x2a8] sm:$0xff]
  %v81 = vld [vmem:[%s0 + $0x2b8] sm:$0xff]
  %v82 = vld [vmem:[%s0 + $0x2c0] sm:$0xff]
  %v83 = vld [vmem:[%s0 + $0x2d0] sm:$0xff]
  %v84 = vld [vmem:[%s0 + $0x2d8] sm:$0xff]
  %v85 = vld [vmem:[%s0 + $0x2e8] sm:$0xff]
  %v86 = vld [vmem:[%s0 + $0x2f0] sm:$0xff]
  %v87 = vld [vmem:[%s0 + $0x300] sm:$0xff]
  %v88 = vld [vmem:[%s0 + $0x308] sm:$0xff]
  %v89 = vld [vmem:[%s0 + $0x318] sm:$0xff]
  %v90 = vld [vmem:[%s0 + $0x320] sm:$0xff]
  %v91 = vld [vmem:[%s0 + $0x1] sm:$0xff]
  %v92 = vld [vmem:[%s0 + $0x9] sm:$0xff]
  %v93 = vld [vmem:[%s0 + $0x19] sm:$0xff]
  %v94 = vld [vmem:[%s0 + $0x21] sm:$0xff]
  %v95 = vld [vmem:[%s0 + $0x31] sm:$0xff]
  %v96 = vld [vmem:[%s0 + $0x39] sm:$0xff]
  %v97 = vld [vmem:[%s0 + $0x49] sm:$0xff]
  %v98 = vld [vmem:[%s0 + $0x51] sm:$0xff]
  %v99 = vld [vmem:[%s0 + $0x61] sm:$0xff]
  %v100 = vld [vmem:[%s0 + $0x69] sm:$0xff]
  %v101 = vld [vmem:[%s0 + $0x79] sm:$0xff]
  %v102 = vld [vmem:[%s0 + $0x81] sm:$0xff]
  %v103 = vld [vmem:[%s0 + $0x91] sm:$0xff]
  %v104 = vld [vmem:[%s0 + $0x99] sm:$0xff]
  %v105 = vld [vmem:[%s0 + $0xa9] sm:$0xff]
  %v106 = vld [vmem:[%s0 + $0xb1] sm:$0xff]
  %v107 = vld [vmem:[%s0 + $0xc1] sm:$0xff]
  %v108 = vld [vmem:[%s0 + $0xc9] sm:$0xff]
  %v109 = vld [vmem:[%s0 + $0xd9] sm:$0xff]
  %v110 = vld [vmem:[%s0 + $0xe1] sm:$0xff]
  %v111 = vld [vmem:[%s0 + $0xf1] sm:$0xff]
  %v112 = vld [vmem:[%s0 + $0xf9] sm:$0xff]
  %v113 = vld [vmem:[%s0 + $0x109] sm:$0xff]
  %v114 = vld [vmem:[%s0 + $0x111] sm:$0xff]
  %v115 = vld [vmem:[%s0 + $0x121] sm:$0xff]
  %v116 = vld [vmem:[%s0 + $0x129] sm:$0xff]
  %v117 = vld [vmem:[%s0 + $0x139] sm:$0xff]
  %v118 = vld [vmem:[%s0 + $0x141] sm:$0xff]
  %v119 = vld [vmem:[%s0 + $0x151] sm:$0xff]
  %v120 = vld [vmem:[%s0 + $0x159] sm:$0xff]
  %v121 = vld [vmem:[%s0 + $0x169] sm:$0xff]
  %v122 = vld [vmem:[%s0 + $0x171] sm:$0xff]
  %v123 = vld [vmem:[%s0 + $0x1b1] sm:$0xff]
  %v124 = vld [vmem:[%s0 + $0x1b9] sm:$0xff]
  %v125 = vld [vmem:[%s0 + $0x1c9] sm:$0xff]
  %v126 = vld [vmem:[%s0 + $0x1d1] sm:$0xff]
  %v127 = vld [vmem:[%s0 + $0x1e1] sm:$0xff]
  %v128 = vld [vmem:[%s0 + $0x1e9] sm:$0xff]
  %v129 = vld [vmem:[%s0 + $0x1f9] sm:$0xff]
  %v130 = vld [vmem:[%s0 + $0x201] sm:$0xff]
  %v131 = vld [vmem:[%s0 + $0x211] sm:$0xff]
  %v132 = vld [vmem:[%s0 + $0x219] sm:$0xff]
  %v133 = vld [vmem:[%s0 + $0x229] sm:$0xff]
  %v134 = vld [vmem:[%s0 + $0x231] sm:$0xff]
  %v135 = vld [vmem:[%s0 + $0x241] sm:$0xff]
  %v136 = vld [vmem:[%s0 + $0x249] sm:$0xff]
  %v137 = vld [vmem:[%s0 + $0x259] sm:$0xff]
  %v138 = vld [vmem:[%s0 + $0x261] sm:$0xff]
  %v139 = vld [vmem:[%s0 + $0x271] sm:$0xff]
  %v140 = vld [vmem:[%s0 + $0x279] sm:$0xff]
  %v141 = vld [vmem:[%s0 + $0x289] sm:$0xff]
  %v142 = vld [vmem:[%s0 + $0x291] sm:$0xff]
  %v143 = vld [vmem:[%s0 + $0x2a1] sm:$0xff]
  %v144 = vld [vmem:[%s0 + $0x2a9] sm:$0xff]
  %v145 = vld [vmem:[%s0 + $0x2b9] sm:$0xff]
  %v146 = vld [vmem:[%s0 + $0x2c1] sm:$0xff]
  %v147 = vld [vmem:[%s0 + $0x2d1] sm:$0xff]
  %v148 = vld [vmem:[%s0 + $0x2d9] sm:$0xff]
  %v149 = vld [vmem:[%s0 + $0x2e9] sm:$0xff]
  %v150 = vld [vmem:[%s0 + $0x2f1] sm:$0xff]
  %v151 = vld [vmem:[%s0 + $0x301] sm:$0xff]
  %v152 = vld [vmem:[%s0 + $0x309] sm:$0xff]
  %v153 = vld [vmem:[%s0 + $0x319] sm:$0xff]
  %v154 = vld [vmem:[%s0 + $0x321] sm:$0xff]
  %v155 = vld [vmem:[%s0 + $0x2] sm:$0xff]
  %v156 = vld [vmem:[%s0 + $0xa] sm:$0xff]
  %v157 = vld [vmem:[%s0 + $0x1a] sm:$0xff]
  %v158 = vld [vmem:[%s0 + $0x22] sm:$0xff]
  %v159 = vld [vmem:[%s0 + $0x32] sm:$0xff]
  %v160 = vld [vmem:[%s0 + $0x3a] sm:$0xff]
  %v161 = vld [vmem:[%s0 + $0x4a] sm:$0xff]
  %v162 = vld [vmem:[%s0 + $0x52] sm:$0xff]
  %v163 = vld [vmem:[%s0 + $0x62] sm:$0xff]
  %v164 = vld [vmem:[%s0 + $0x6a] sm:$0xff]
  %v165 = vld [vmem:[%s0 + $0x7a] sm:$0xff]
  %v166 = vld [vmem:[%s0 + $0x82] sm:$0xff]
  %v167 = vld [vmem:[%s0 + $0x92] sm:$0xff]
  %v168 = vld [vmem:[%s0 + $0x9a] sm:$0xff]
  %v169 = vld [vmem:[%s0 + $0xaa] sm:$0xff]
  %v170 = vld [vmem:[%s0 + $0xb2] sm:$0xff]
  %v171 = vld [vmem:[%s0 + $0xc2] sm:$0xff]
  %v172 = vld [vmem:[%s0 + $0xca] sm:$0xff]
  %v173 = vld [vmem:[%s0 + $0xda] sm:$0xff]
  %v174 = vld [vmem:[%s0 + $0xe2] sm:$0xff]
  %v175 = vld [vmem:[%s0 + $0xf2] sm:$0xff]
  %v176 = vld [vmem:[%s0 + $0xfa] sm:$0xff]
  %v177 = vld [vmem:[%s0 + $0x10a] sm:$0xff]
  %v178 = vld [vmem:[%s0 + $0x112] sm:$0xff]
  %v179 = vld [vmem:[%s0 + $0x122] sm:$0xff]
  %v180 = vld [vmem:[%s0 + $0x12a] sm:$0xff]
  %v181 = vld [vmem:[%s0 + $0x13a] sm:$0xff]
  %v182 = vld [vmem:[%s0 + $0x142] sm:$0xff]
  %v183 = vld [vmem:[%s0 + $0x152] sm:$0xff]
  %v184 = vld [vmem:[%s0 + $0x15a] sm:$0xff]
  %v185 = vld [vmem:[%s0 + $0x16a] sm:$0xff]
  %v186 = vld [vmem:[%s0 + $0x172] sm:$0xff]
  %v187 = vld [vmem:[%s0 + $0x1b2] sm:$0xff]
  %v188 = vld [vmem:[%s0 + $0x1ba] sm:$0xff]
  %v189 = vld [vmem:[%s0 + $0x1ca] sm:$0xff]
  %v190 = vld [vmem:[%s0 + $0x1d2] sm:$0xff]
  %v191 = vld [vmem:[%s0 + $0x1e2] sm:$0xff]
  %v192 = vld [vmem:[%s0 + $0x1ea] sm:$0xff]
  %v193 = vld [vmem:[%s0 + $0x1fa] sm:$0xff]
  %v194 = vld [vmem:[%s0 + $0x202] sm:$0xff]
  %v195 = vld [vmem:[%s0 + $0x212] sm:$0xff]
  %v196 = vld [vmem:[%s0 + $0x21a] sm:$0xff]
  %v197 = vld [vmem:[%s0 + $0x22a] sm:$0xff]
  %v198 = vld [vmem:[%s0 + $0x232] sm:$0xff]
  %v199 = vld [vmem:[%s0 + $0x242] sm:$0xff]
  %v200 = vld [vmem:[%s0 + $0x24a] sm:$0xff]
  %v201 = vld [vmem:[%s0 + $0x25a] sm:$0xff]
  %v202 = vld [vmem:[%s0 + $0x262] sm:$0xff]
  %v203 = vld [vmem:[%s0 + $0x272] sm:$0xff]
  %v204 = vld [vmem:[%s0 + $0x27a] sm:$0xff]
  %v205 = vld [vmem:[%s0 + $0x28a] sm:$0xff]
  %v206 = vld [vmem:[%s0 + $0x292] sm:$0xff]
  %v207 = vld [vmem:[%s0 + $0x2a2] sm:$0xff]
  %v208 = vld [vmem:[%s0 + $0x2aa] sm:$0xff]
  %v209 = vld [vmem:[%s0 + $0x2ba] sm:$0xff]
  %v210 = vld [vmem:[%s0 + $0x2c2] sm:$0xff]
  %v211 = vld [vmem:[%s0 + $0x2d2] sm:$0xff]
  %v212 = vld [vmem:[%s0 + $0x2da] sm:$0xff]
  %v213 = vld [vmem:[%s0 + $0x2ea] sm:$0xff]
  %v214 = vld [vmem:[%s0 + $0x2f2] sm:$0xff]
  %v215 = vld [vmem:[%s0 + $0x302] sm:$0xff]
  %v216 = vld [vmem:[%s0 + $0x30a] sm:$0xff]
  %v217 = vld [vmem:[%s0 + $0x31a] sm:$0xff]
  %v218 = vld [vmem:[%s0 + $0x322] sm:$0xff]
  %s219 = scalar_lea.vmem %s0, 24
  %v220 = vld [vmem:[%s219] sm:$0xff]
  %v221 = vld [vmem:[%s219 + $0x8] sm:$0xff]
  %v222 = vld [vmem:[%s219 + $0x18] sm:$0xff]
  %v223 = vld [vmem:[%s219 + $0x20] sm:$0xff]
  %v224 = vld [vmem:[%s219 + $0x30] sm:$0xff]
  %v225 = vld [vmem:[%s219 + $0x38] sm:$0xff]
  %v226 = vld [vmem:[%s219 + $0x48] sm:$0xff]
  %v227 = vld [vmem:[%s219 + $0x50] sm:$0xff]
  %v228 = vld [vmem:[%s219 + $0x60] sm:$0xff]
  %v229 = vld [vmem:[%s219 + $0x68] sm:$0xff]
  %v230 = vld [vmem:[%s219 + $0x78] sm:$0xff]
  %v231 = vld [vmem:[%s219 + $0x80] sm:$0xff]
  %v232 = vld [vmem:[%s219 + $0x90] sm:$0xff]
  %v233 = vld [vmem:[%s219 + $0x98] sm:$0xff]
  %v234 = vld [vmem:[%s219 + $0xa8] sm:$0xff]
  %v235 = vld [vmem:[%s219 + $0xb0] sm:$0xff]
  %v236 = vld [vmem:[%s219 + $0xc0] sm:$0xff]
  %v237 = vld [vmem:[%s219 + $0xc8] sm:$0xff]
  %v238 = vld [vmem:[%s219 + $0xd8] sm:$0xff]
  %v239 = vld [vmem:[%s219 + $0xe0] sm:$0xff]
  %v240 = vld [vmem:[%s219 + $0xf0] sm:$0xff]
  %v241 = vld [vmem:[%s219 + $0xf8] sm:$0xff]
  %v242 = vld [vmem:[%s219 + $0x108] sm:$0xff]
  %v243 = vld [vmem:[%s219 + $0x110] sm:$0xff]
  %v244 = vld [vmem:[%s219 + $0x120] sm:$0xff]
  %v245 = vld [vmem:[%s219 + $0x128] sm:$0xff]
  %v246 = vld [vmem:[%s219 + $0x138] sm:$0xff]
  %v247 = vld [vmem:[%s219 + $0x140] sm:$0xff]
  %v248 = vld [vmem:[%s219 + $0x150] sm:$0xff]
  %v249 = vld [vmem:[%s219 + $0x158] sm:$0xff]
  %v250 = vld [vmem:[%s219 + $0x168] sm:$0xff]
  %v251 = vld [vmem:[%s219 + $0x170] sm:$0xff]
  %v252 = vld [vmem:[%s219 + $0x1b0] sm:$0xff]
  %v253 = vld [vmem:[%s219 + $0x1b8] sm:$0xff]
  %v254 = vld [vmem:[%s219 + $0x1c8] sm:$0xff]
  %v255 = vld [vmem:[%s219 + $0x1d0] sm:$0xff]
  %v256 = vld [vmem:[%s219 + $0x1e0] sm:$0xff]
  %v257 = vld [vmem:[%s219 + $0x1e8] sm:$0xff]
  %v258 = vld [vmem:[%s219 + $0x1f8] sm:$0xff]
  %v259 = vld [vmem:[%s219 + $0x200] sm:$0xff]
  %v260 = vld [vmem:[%s219 + $0x210] sm:$0xff]
  %v261 = vld [vmem:[%s219 + $0x218] sm:$0xff]
  %v262 = vld [vmem:[%s219 + $0x228] sm:$0xff]
  %v263 = vld [vmem:[%s219 + $0x230] sm:$0xff]
  %v264 = vld [vmem:[%s219 + $0x240] sm:$0xff]
  %v265 = vld [vmem:[%s219 + $0x248] sm:$0xff]
  %v266 = vld [vmem:[%s219 + $0x258] sm:$0xff]
  %v267 = vld [vmem:[%s219 + $0x260] sm:$0xff]
  %v268 = vld [vmem:[%s219 + $0x270] sm:$0xff]
  %v269 = vld [vmem:[%s219 + $0x278] sm:$0xff]
  %v270 = vld [vmem:[%s219 + $0x288] sm:$0xff]
  %v271 = vld [vmem:[%s219 + $0x290] sm:$0xff]
  %v272 = vld [vmem:[%s219 + $0x2a0] sm:$0xff]
  %v273 = vld [vmem:[%s219 + $0x2a8] sm:$0xff]
  %v274 = vld [vmem:[%s219 + $0x2b8] sm:$0xff]
  %v275 = vld [vmem:[%s219 + $0x2c0] sm:$0xff]
  %v276 = vld [vmem:[%s219 + $0x2d0] sm:$0xff]
  %v277 = vld [vmem:[%s219 + $0x2d8] sm:$0xff]
  %v278 = vld [vmem:[%s219 + $0x2e8] sm:$0xff]
  %v279 = vld [vmem:[%s219 + $0x2f0] sm:$0xff]
  %v280 = vld [vmem:[%s219 + $0x300] sm:$0xff]
  %v281 = vld [vmem:[%s219 + $0x308] sm:$0xff]
  %v282 = vld [vmem:[%s219 + $0x318] sm:$0xff]
  %v283 = vld [vmem:[%s219 + $0x320] sm:$0xff]
  %v284 = vld [vmem:[%s219 + $0x1] sm:$0xff]
  %v285 = vld [vmem:[%s219 + $0x9] sm:$0xff]
  %v286 = vld [vmem:[%s219 + $0x19] sm:$0xff]
  %v287 = vld [vmem:[%s219 + $0x21] sm:$0xff]
  %v288 = vld [vmem:[%s219 + $0x31] sm:$0xff]
  %v289 = vld [vmem:[%s219 + $0x39] sm:$0xff]
  %v290 = vld [vmem:[%s219 + $0x49] sm:$0xff]
  %v291 = vld [vmem:[%s219 + $0x51] sm:$0xff]
  %v292 = vld [vmem:[%s219 + $0x61] sm:$0xff]
  %v293 = vld [vmem:[%s219 + $0x69] sm:$0xff]
  %v294 = vld [vmem:[%s219 + $0x79] sm:$0xff]
  %v295 = vld [vmem:[%s219 + $0x81] sm:$0xff]
  %v296 = vld [vmem:[%s219 + $0x91] sm:$0xff]
  %v297 = vld [vmem:[%s219 + $0x99] sm:$0xff]
  %v298 = vld [vmem:[%s219 + $0xa9] sm:$0xff]
  %v299 = vld [vmem:[%s219 + $0xb1] sm:$0xff]
  %v300 = vld [vmem:[%s219 + $0xc1] sm:$0xff]
  %v301 = vld [vmem:[%s219 + $0xc9] sm:$0xff]
  %v302 = vld [vmem:[%s219 + $0xd9] sm:$0xff]
  %v303 = vld [vmem:[%s219 + $0xe1] sm:$0xff]
  %v304 = vld [vmem:[%s219 + $0xf1] sm:$0xff]
  %v305 = vld [vmem:[%s219 + $0xf9] sm:$0xff]
  %v306 = vld [vmem:[%s219 + $0x109] sm:$0xff]
  %v307 = vld [vmem:[%s219 + $0x111] sm:$0xff]
  %v308 = vld [vmem:[%s219 + $0x121] sm:$0xff]
  %v309 = vld [vmem:[%s219 + $0x129] sm:$0xff]
  %v310 = vld [vmem:[%s219 + $0x139] sm:$0xff]
  %v311 = vld [vmem:[%s219 + $0x141] sm:$0xff]
  %v312 = vld [vmem:[%s219 + $0x151] sm:$0xff]
  %v313 = vld [vmem:[%s219 + $0x159] sm:$0xff]
  %v314 = vld [vmem:[%s219 + $0x169] sm:$0xff]
  %v315 = vld [vmem:[%s219 + $0x171] sm:$0xff]
  %v316 = vld [vmem:[%s219 + $0x1b1] sm:$0xff]
  %v317 = vld [vmem:[%s219 + $0x1b9] sm:$0xff]
  %v318 = vld [vmem:[%s219 + $0x1c9] sm:$0xff]
  %v319 = vld [vmem:[%s219 + $0x1d1] sm:$0xff]
  %v320 = vld [vmem:[%s219 + $0x1e1] sm:$0xff]
  %v321 = vld [vmem:[%s219 + $0x1e9] sm:$0xff]
  %v322 = vld [vmem:[%s219 + $0x1f9] sm:$0xff]
  %v323 = vld [vmem:[%s219 + $0x201] sm:$0xff]
  %v324 = vld [vmem:[%s219 + $0x211] sm:$0xff]
  %v325 = vld [vmem:[%s219 + $0x219] sm:$0xff]
  %v326 = vld [vmem:[%s219 + $0x229] sm:$0xff]
  %v327 = vld [vmem:[%s219 + $0x231] sm:$0xff]
  %v328 = vld [vmem:[%s219 + $0x241] sm:$0xff]
  %v329 = vld [vmem:[%s219 + $0x249] sm:$0xff]
  %v330 = vld [vmem:[%s219 + $0x259] sm:$0xff]
  %v331 = vld [vmem:[%s219 + $0x261] sm:$0xff]
  %v332 = vld [vmem:[%s219 + $0x271] sm:$0xff]
  %v333 = vld [vmem:[%s219 + $0x279] sm:$0xff]
  %v334 = vld [vmem:[%s219 + $0x289] sm:$0xff]
  %v335 = vld [vmem:[%s219 + $0x291] sm:$0xff]
  %v336 = vld [vmem:[%s219 + $0x2a1] sm:$0xff]
  %v337 = vld [vmem:[%s219 + $0x2a9] sm:$0xff]
  %v338 = vld [vmem:[%s219 + $0x2b9] sm:$0xff]
  %v339 = vld [vmem:[%s219 + $0x2c1] sm:$0xff]
  %v340 = vld [vmem:[%s219 + $0x2d1] sm:$0xff]
  %v341 = vld [vmem:[%s219 + $0x2d9] sm:$0xff]
  %v342 = vld [vmem:[%s219 + $0x2e9] sm:$0xff]
  %v343 = vld [vmem:[%s219 + $0x2f1] sm:$0xff]
  %v344 = vld [vmem:[%s219 + $0x301] sm:$0xff]
  %v345 = vld [vmem:[%s219 + $0x309] sm:$0xff]
  %v346 = vld [vmem:[%s219 + $0x319] sm:$0xff]
  %v347 = vld [vmem:[%s219 + $0x321] sm:$0xff]
  %v348 = vld [vmem:[%s219 + $0x2] sm:$0xff]
  %v349 = vld [vmem:[%s219 + $0xa] sm:$0xff]
  %v350 = vld [vmem:[%s219 + $0x1a] sm:$0xff]
  %v351 = vld [vmem:[%s219 + $0x22] sm:$0xff]
  %v352 = vld [vmem:[%s219 + $0x32] sm:$0xff]
  %v353 = vld [vmem:[%s219 + $0x3a] sm:$0xff]
  %v354 = vld [vmem:[%s219 + $0x4a] sm:$0xff]
  %v355 = vld [vmem:[%s219 + $0x52] sm:$0xff]
  %v356 = vld [vmem:[%s219 + $0x62] sm:$0xff]
  %v357 = vld [vmem:[%s219 + $0x6a] sm:$0xff]
  %v358 = vld [vmem:[%s219 + $0x7a] sm:$0xff]
  %v359 = vld [vmem:[%s219 + $0x82] sm:$0xff]
  %v360 = vld [vmem:[%s219 + $0x92] sm:$0xff]
  %v361 = vld [vmem:[%s219 + $0x9a] sm:$0xff]
  %v362 = vld [vmem:[%s219 + $0xaa] sm:$0xff]
  %v363 = vld [vmem:[%s219 + $0xb2] sm:$0xff]
  %v364 = vld [vmem:[%s219 + $0xc2] sm:$0xff]
  %v365 = vld [vmem:[%s219 + $0xca] sm:$0xff]
  %v366 = vld [vmem:[%s219 + $0xda] sm:$0xff]
  %v367 = vld [vmem:[%s219 + $0xe2] sm:$0xff]
  %v368 = vld [vmem:[%s219 + $0xf2] sm:$0xff]
  %v369 = vld [vmem:[%s219 + $0xfa] sm:$0xff]
  %v370 = vld [vmem:[%s219 + $0x10a] sm:$0xff]
  %v371 = vld [vmem:[%s219 + $0x112] sm:$0xff]
  %v372 = vld [vmem:[%s219 + $0x122] sm:$0xff]
  %v373 = vld [vmem:[%s219 + $0x12a] sm:$0xff]
  %v374 = vld [vmem:[%s219 + $0x13a] sm:$0xff]
  %v375 = vld [vmem:[%s219 + $0x142] sm:$0xff]
  %v376 = vld [vmem:[%s219 + $0x152] sm:$0xff]
  %v377 = vld [vmem:[%s219 + $0x15a] sm:$0xff]
  %v378 = vld [vmem:[%s219 + $0x16a] sm:$0xff]
  %v379 = vld [vmem:[%s219 + $0x172] sm:$0xff]
  %v380 = vld [vmem:[%s219 + $0x1b2] sm:$0xff]
  %v381 = vld [vmem:[%s219 + $0x1ba] sm:$0xff]
  %v382 = vld [vmem:[%s219 + $0x1ca] sm:$0xff]
  %v383 = vld [vmem:[%s219 + $0x1d2] sm:$0xff]
  %v384 = vld [vmem:[%s219 + $0x1e2] sm:$0xff]
  %v385 = vld [vmem:[%s219 + $0x1ea] sm:$0xff]
  %v386 = vld [vmem:[%s219 + $0x1fa] sm:$0xff]
  %v387 = vld [vmem:[%s219 + $0x202] sm:$0xff]
  %v388 = vld [vmem:[%s219 + $0x212] sm:$0xff]
  %v389 = vld [vmem:[%s219 + $0x21a] sm:$0xff]
  %v390 = vld [vmem:[%s219 + $0x22a] sm:$0xff]
  %v391 = vld [vmem:[%s219 + $0x232] sm:$0xff]
  %v392 = vld [vmem:[%s219 + $0x242] sm:$0xff]
  %v393 = vld [vmem:[%s219 + $0x24a] sm:$0xff]
  %v394 = vld [vmem:[%s219 + $0x25a] sm:$0xff]
  %v395 = vld [vmem:[%s219 + $0x262] sm:$0xff]
  %v396 = vld [vmem:[%s219 + $0x272] sm:$0xff]
  %v397 = vld [vmem:[%s219 + $0x27a] sm:$0xff]
  %v398 = vld [vmem:[%s219 + $0x28a] sm:$0xff]
  %v399 = vld [vmem:[%s219 + $0x292] sm:$0xff]
  %v400 = vld [vmem:[%s219 + $0x2a2] sm:$0xff]
  %v401 = vld [vmem:[%s219 + $0x2aa] sm:$0xff]
  %v402 = vld [vmem:[%s219 + $0x2ba] sm:$0xff]
  %v403 = vld [vmem:[%s219 + $0x2c2] sm:$0xff]
  %v404 = vld [vmem:[%s219 + $0x2d2] sm:$0xff]
  %v405 = vld [vmem:[%s219 + $0x2da] sm:$0xff]
  %v406 = vld [vmem:[%s219 + $0x2ea] sm:$0xff]
  %v407 = vld [vmem:[%s219 + $0x2f2] sm:$0xff]
  %v408 = vld [vmem:[%s219 + $0x302] sm:$0xff]
  %v409 = vld [vmem:[%s219 + $0x30a] sm:$0xff]
  %v410 = vld [vmem:[%s219 + $0x31a] sm:$0xff]
  %v411 = vld [vmem:[%s219 + $0x322] sm:$0xff]
  %s412 = scalar_lea.vmem %s0, 48
  %v413 = vld [vmem:[%s412] sm:$0xff]
  %v414 = vld [vmem:[%s412 + $0x8] sm:$0xff]
  %v415 = vld [vmem:[%s412 + $0x18] sm:$0xff]
  %v416 = vld [vmem:[%s412 + $0x20] sm:$0xff]
  %v417 = vld [vmem:[%s412 + $0x30] sm:$0xff]
  %v418 = vld [vmem:[%s412 + $0x38] sm:$0xff]
  %v419 = vld [vmem:[%s412 + $0x48] sm:$0xff]
  %v420 = vld [vmem:[%s412 + $0x50] sm:$0xff]
  %v421 = vld [vmem:[%s412 + $0x60] sm:$0xff]
  %v422 = vld [vmem:[%s412 + $0x68] sm:$0xff]
  %v423 = vld [vmem:[%s412 + $0x78] sm:$0xff]
  %v424 = vld [vmem:[%s412 + $0x80] sm:$0xff]
  %v425 = vld [vmem:[%s412 + $0x90] sm:$0xff]
  %v426 = vld [vmem:[%s412 + $0x98] sm:$0xff]
  %v427 = vld [vmem:[%s412 + $0xa8] sm:$0xff]
  %v428 = vld [vmem:[%s412 + $0xb0] sm:$0xff]
  %v429 = vld [vmem:[%s412 + $0xc0] sm:$0xff]
  %v430 = vld [vmem:[%s412 + $0xc8] sm:$0xff]
  %v431 = vld [vmem:[%s412 + $0xd8] sm:$0xff]
  %v432 = vld [vmem:[%s412 + $0xe0] sm:$0xff]
  %v433 = vld [vmem:[%s412 + $0xf0] sm:$0xff]
  %v434 = vld [vmem:[%s412 + $0xf8] sm:$0xff]
  %v435 = vld [vmem:[%s412 + $0x108] sm:$0xff]
  %v436 = vld [vmem:[%s412 + $0x110] sm:$0xff]
  %v437 = vld [vmem:[%s412 + $0x120] sm:$0xff]
  %v438 = vld [vmem:[%s412 + $0x128] sm:$0xff]
  %v439 = vld [vmem:[%s412 + $0x138] sm:$0xff]
  %v440 = vld [vmem:[%s412 + $0x140] sm:$0xff]
  %v441 = vld [vmem:[%s412 + $0x150] sm:$0xff]
  %v442 = vld [vmem:[%s412 + $0x158] sm:$0xff]
  %v443 = vld [vmem:[%s412 + $0x168] sm:$0xff]
  %v444 = vld [vmem:[%s412 + $0x170] sm:$0xff]
  %v445 = vld [vmem:[%s412 + $0x1b0] sm:$0xff]
  %v446 = vld [vmem:[%s412 + $0x1b8] sm:$0xff]
  %v447 = vld [vmem:[%s412 + $0x1c8] sm:$0xff]
  %v448 = vld [vmem:[%s412 + $0x1d0] sm:$0xff]
  %v449 = vld [vmem:[%s412 + $0x1e0] sm:$0xff]
  %v450 = vld [vmem:[%s412 + $0x1e8] sm:$0xff]
  %v451 = vld [vmem:[%s412 + $0x1f8] sm:$0xff]
  %v452 = vld [vmem:[%s412 + $0x200] sm:$0xff]
  %v453 = vld [vmem:[%s412 + $0x210] sm:$0xff]
  %v454 = vld [vmem:[%s412 + $0x218] sm:$0xff]
  %v455 = vld [vmem:[%s412 + $0x228] sm:$0xff]
  %v456 = vld [vmem:[%s412 + $0x230] sm:$0xff]
  %v457 = vld [vmem:[%s412 + $0x240] sm:$0xff]
  %v458 = vld [vmem:[%s412 + $0x248] sm:$0xff]
  %v459 = vld [vmem:[%s412 + $0x258] sm:$0xff]
  %v460 = vld [vmem:[%s412 + $0x260] sm:$0xff]
  %v461 = vld [vmem:[%s412 + $0x270] sm:$0xff]
  %v462 = vld [vmem:[%s412 + $0x278] sm:$0xff]
  %v463 = vld [vmem:[%s412 + $0x288] sm:$0xff]
  %v464 = vld [vmem:[%s412 + $0x290] sm:$0xff]
  %v465 = vld [vmem:[%s412 + $0x2a0] sm:$0xff]
  %v466 = vld [vmem:[%s412 + $0x2a8] sm:$0xff]
  %v467 = vld [vmem:[%s412 + $0x2b8] sm:$0xff]
  %v468 = vld [vmem:[%s412 + $0x2c0] sm:$0xff]
  %v469 = vld [vmem:[%s412 + $0x2d0] sm:$0xff]
  %v470 = vld [vmem:[%s412 + $0x2d8] sm:$0xff]
  %v471 = vld [vmem:[%s412 + $0x2e8] sm:$0xff]
  %v472 = vld [vmem:[%s412 + $0x2f0] sm:$0xff]
  %v473 = vld [vmem:[%s412 + $0x300] sm:$0xff]
  %v474 = vld [vmem:[%s412 + $0x308] sm:$0xff]
  %v475 = vld [vmem:[%s412 + $0x318] sm:$0xff]
  %v476 = vld [vmem:[%s412 + $0x320] sm:$0xff]
  %v477 = vld [vmem:[%s412 + $0x1] sm:$0xff]
  %v478 = vld [vmem:[%s412 + $0x9] sm:$0xff]
  %v479 = vld [vmem:[%s412 + $0x19] sm:$0xff]
  %v480 = vld [vmem:[%s412 + $0x21] sm:$0xff]
  %v481 = vld [vmem:[%s412 + $0x31] sm:$0xff]
  %v482 = vld [vmem:[%s412 + $0x39] sm:$0xff]
  %v483 = vld [vmem:[%s412 + $0x49] sm:$0xff]
  %v484 = vld [vmem:[%s412 + $0x51] sm:$0xff]
  %v485 = vld [vmem:[%s412 + $0x61] sm:$0xff]
  %v486 = vld [vmem:[%s412 + $0x69] sm:$0xff]
  %v487 = vld [vmem:[%s412 + $0x79] sm:$0xff]
  %v488 = vld [vmem:[%s412 + $0x81] sm:$0xff]
  %v489 = vld [vmem:[%s412 + $0x91] sm:$0xff]
  %v490 = vld [vmem:[%s412 + $0x99] sm:$0xff]
  %v491 = vld [vmem:[%s412 + $0xa9] sm:$0xff]
  %v492 = vld [vmem:[%s412 + $0xb1] sm:$0xff]
  %v493 = vld [vmem:[%s412 + $0xc1] sm:$0xff]
  %v494 = vld [vmem:[%s412 + $0xc9] sm:$0xff]
  %v495 = vld [vmem:[%s412 + $0xd9] sm:$0xff]
  %v496 = vld [vmem:[%s412 + $0xe1] sm:$0xff]
  %v497 = vld [vmem:[%s412 + $0xf1] sm:$0xff]
  %v498 = vld [vmem:[%s412 + $0xf9] sm:$0xff]
  %v499 = vld [vmem:[%s412 + $0x109] sm:$0xff]
  %v500 = vld [vmem:[%s412 + $0x111] sm:$0xff]
  %v501 = vld [vmem:[%s412 + $0x121] sm:$0xff]
  %v502 = vld [vmem:[%s412 + $0x129] sm:$0xff]
  %v503 = vld [vmem:[%s412 + $0x139] sm:$0xff]
  %v504 = vld [vmem:[%s412 + $0x141] sm:$0xff]
  %v505 = vld [vmem:[%s412 + $0x151] sm:$0xff]
  %v506 = vld [vmem:[%s412 + $0x159] sm:$0xff]
  %v507 = vld [vmem:[%s412 + $0x169] sm:$0xff]
  %v508 = vld [vmem:[%s412 + $0x171] sm:$0xff]
  %v509 = vld [vmem:[%s412 + $0x1b1] sm:$0xff]
  %v510 = vld [vmem:[%s412 + $0x1b9] sm:$0xff]
  %v511 = vld [vmem:[%s412 + $0x1c9] sm:$0xff]
  %v512 = vld [vmem:[%s412 + $0x1d1] sm:$0xff]
  %v513 = vld [vmem:[%s412 + $0x1e1] sm:$0xff]
  %v514 = vld [vmem:[%s412 + $0x1e9] sm:$0xff]
  %v515 = vld [vmem:[%s412 + $0x1f9] sm:$0xff]
  %v516 = vld [vmem:[%s412 + $0x201] sm:$0xff]
  %v517 = vld [vmem:[%s412 + $0x211] sm:$0xff]
  %v518 = vld [vmem:[%s412 + $0x219] sm:$0xff]
  %v519 = vld [vmem:[%s412 + $0x229] sm:$0xff]
  %v520 = vld [vmem:[%s412 + $0x231] sm:$0xff]
  %v521 = vld [vmem:[%s412 + $0x241] sm:$0xff]
  %v522 = vld [vmem:[%s412 + $0x249] sm:$0xff]
  %v523 = vld [vmem:[%s412 + $0x259] sm:$0xff]
  %v524 = vld [vmem:[%s412 + $0x261] sm:$0xff]
  %v525 = vld [vmem:[%s412 + $0x271] sm:$0xff]
  %v526 = vld [vmem:[%s412 + $0x279] sm:$0xff]
  %v527 = vld [vmem:[%s412 + $0x289] sm:$0xff]
  %v528 = vld [vmem:[%s412 + $0x291] sm:$0xff]
  %v529 = vld [vmem:[%s412 + $0x2a1] sm:$0xff]
  %v530 = vld [vmem:[%s412 + $0x2a9] sm:$0xff]
  %v531 = vld [vmem:[%s412 + $0x2b9] sm:$0xff]
  %v532 = vld [vmem:[%s412 + $0x2c1] sm:$0xff]
  %v533 = vld [vmem:[%s412 + $0x2d1] sm:$0xff]
  %v534 = vld [vmem:[%s412 + $0x2d9] sm:$0xff]
  %v535 = vld [vmem:[%s412 + $0x2e9] sm:$0xff]
  %v536 = vld [vmem:[%s412 + $0x2f1] sm:$0xff]
  %v537 = vld [vmem:[%s412 + $0x301] sm:$0xff]
  %v538 = vld [vmem:[%s412 + $0x309] sm:$0xff]
  %v539 = vld [vmem:[%s412 + $0x319] sm:$0xff]
  %v540 = vld [vmem:[%s412 + $0x321] sm:$0xff]
  %v541 = vld [vmem:[%s412 + $0x2] sm:$0xff]
  %v542 = vld [vmem:[%s412 + $0xa] sm:$0xff]
  %v543 = vld [vmem:[%s412 + $0x1a] sm:$0xff]
  %v544 = vld [vmem:[%s412 + $0x22] sm:$0xff]
  %v545 = vld [vmem:[%s412 + $0x32] sm:$0xff]
  %v546 = vld [vmem:[%s412 + $0x3a] sm:$0xff]
  %v547 = vld [vmem:[%s412 + $0x4a] sm:$0xff]
  %v548 = vld [vmem:[%s412 + $0x52] sm:$0xff]
  %v549 = vld [vmem:[%s412 + $0x62] sm:$0xff]
  %v550 = vld [vmem:[%s412 + $0x6a] sm:$0xff]
  %v551 = vld [vmem:[%s412 + $0x7a] sm:$0xff]
  %v552 = vld [vmem:[%s412 + $0x82] sm:$0xff]
  %v553 = vld [vmem:[%s412 + $0x92] sm:$0xff]
  %v554 = vld [vmem:[%s412 + $0x9a] sm:$0xff]
  %v555 = vld [vmem:[%s412 + $0xaa] sm:$0xff]
  %v556 = vld [vmem:[%s412 + $0xb2] sm:$0xff]
  %v557 = vld [vmem:[%s412 + $0xc2] sm:$0xff]
  %v558 = vld [vmem:[%s412 + $0xca] sm:$0xff]
  %v559 = vld [vmem:[%s412 + $0xda] sm:$0xff]
  %v560 = vld [vmem:[%s412 + $0xe2] sm:$0xff]
  %v561 = vld [vmem:[%s412 + $0xf2] sm:$0xff]
  %v562 = vld [vmem:[%s412 + $0xfa] sm:$0xff]
  %v563 = vld [vmem:[%s412 + $0x10a] sm:$0xff]
  %v564 = vld [vmem:[%s412 + $0x112] sm:$0xff]
  %v565 = vld [vmem:[%s412 + $0x122] sm:$0xff]
  %v566 = vld [vmem:[%s412 + $0x12a] sm:$0xff]
  %v567 = vld [vmem:[%s412 + $0x13a] sm:$0xff]
  %v568 = vld [vmem:[%s412 + $0x142] sm:$0xff]
  %v569 = vld [vmem:[%s412 + $0x152] sm:$0xff]
  %v570 = vld [vmem:[%s412 + $0x15a] sm:$0xff]
  %v571 = vld [vmem:[%s412 + $0x16a] sm:$0xff]
  %v572 = vld [vmem:[%s412 + $0x172] sm:$0xff]
  %v573 = vld [vmem:[%s412 + $0x1b2] sm:$0xff]
  %v574 = vld [vmem:[%s412 + $0x1ba] sm:$0xff]
  %v575 = vld [vmem:[%s412 + $0x1ca] sm:$0xff]
  %v576 = vld [vmem:[%s412 + $0x1d2] sm:$0xff]
  %v577 = vld [vmem:[%s412 + $0x1e2] sm:$0xff]
  %v578 = vld [vmem:[%s412 + $0x1ea] sm:$0xff]
  %v579 = vld [vmem:[%s412 + $0x1fa] sm:$0xff]
  %v580 = vld [vmem:[%s412 + $0x202] sm:$0xff]
  %v581 = vld [vmem:[%s412 + $0x212] sm:$0xff]
  %v582 = vld [vmem:[%s412 + $0x21a] sm:$0xff]
  %v583 = vld [vmem:[%s412 + $0x22a] sm:$0xff]
  %v584 = vld [vmem:[%s412 + $0x232] sm:$0xff]
  %v585 = vld [vmem:[%s412 + $0x242] sm:$0xff]
  %v586 = vld [vmem:[%s412 + $0x24a] sm:$0xff]
  %v587 = vld [vmem:[%s412 + $0x25a] sm:$0xff]
  %v588 = vld [vmem:[%s412 + $0x262] sm:$0xff]
  %v589 = vld [vmem:[%s412 + $0x272] sm:$0xff]
  %v590 = vld [vmem:[%s412 + $0x27a] sm:$0xff]
  %v591 = vld [vmem:[%s412 + $0x28a] sm:$0xff]
  %v592 = vld [vmem:[%s412 + $0x292] sm:$0xff]
  %v593 = vld [vmem:[%s412 + $0x2a2] sm:$0xff]
  %v594 = vld [vmem:[%s412 + $0x2aa] sm:$0xff]
  %v595 = vld [vmem:[%s412 + $0x2ba] sm:$0xff]
  %v596 = vld [vmem:[%s412 + $0x2c2] sm:$0xff]
  %v597 = vld [vmem:[%s412 + $0x2d2] sm:$0xff]
  %v598 = vld [vmem:[%s412 + $0x2da] sm:$0xff]
  %v599 = vld [vmem:[%s412 + $0x2ea] sm:$0xff]
  %v600 = vld [vmem:[%s412 + $0x2f2] sm:$0xff]
  %v601 = vld [vmem:[%s412 + $0x302] sm:$0xff]
  %v602 = vld [vmem:[%s412 + $0x30a] sm:$0xff]
  %v603 = vld [vmem:[%s412 + $0x31a] sm:$0xff]
  %v604 = vld [vmem:[%s412 + $0x322] sm:$0xff]
  %669 = vrot.lane.b32.xlu0 %v91, 4
  %v670 = vpop.permute.xlu0 %669
  %671 = vrot.lane.b32.xlu0 %v92, 4
  %v672 = vpop.permute.xlu0 %671
  %673 = vrot.lane.b32.xlu0 %v93, 4
  %v674 = vpop.permute.xlu0 %673
  %675 = vrot.lane.b32.xlu0 %v94, 4
  %v676 = vpop.permute.xlu0 %675
  %677 = vrot.lane.b32.xlu0 %v95, 4
  %v678 = vpop.permute.xlu0 %677
  %679 = vrot.lane.b32.xlu0 %v96, 4
  %v680 = vpop.permute.xlu0 %679
  %681 = vrot.lane.b32.xlu0 %v97, 4
  %v682 = vpop.permute.xlu0 %681
  %683 = vrot.lane.b32.xlu0 %v98, 4
  %v684 = vpop.permute.xlu0 %683
  %685 = vrot.lane.b32.xlu0 %v99, 4
  %v686 = vpop.permute.xlu0 %685
  %687 = vrot.lane.b32.xlu0 %v100, 4
  %v688 = vpop.permute.xlu0 %687
  %689 = vrot.lane.b32.xlu0 %v101, 4
  %v690 = vpop.permute.xlu0 %689
  %691 = vrot.lane.b32.xlu0 %v102, 4
  %v692 = vpop.permute.xlu0 %691
  %693 = vrot.lane.b32.xlu0 %v103, 4
  %v694 = vpop.permute.xlu0 %693
  %695 = vrot.lane.b32.xlu0 %v104, 4
  %v696 = vpop.permute.xlu0 %695
  %697 = vrot.lane.b32.xlu0 %v105, 4
  %v698 = vpop.permute.xlu0 %697
  %699 = vrot.lane.b32.xlu0 %v106, 4
  %v700 = vpop.permute.xlu0 %699
  %701 = vrot.lane.b32.xlu0 %v107, 4
  %v702 = vpop.permute.xlu0 %701
  %703 = vrot.lane.b32.xlu0 %v108, 4
  %v704 = vpop.permute.xlu0 %703
  %705 = vrot.lane.b32.xlu0 %v109, 4
  %v706 = vpop.permute.xlu0 %705
  %707 = vrot.lane.b32.xlu0 %v110, 4
  %v708 = vpop.permute.xlu0 %707
  %709 = vrot.lane.b32.xlu0 %v111, 4
  %v710 = vpop.permute.xlu0 %709
  %711 = vrot.lane.b32.xlu0 %v112, 4
  %v712 = vpop.permute.xlu0 %711
  %713 = vrot.lane.b32.xlu0 %v113, 4
  %v714 = vpop.permute.xlu0 %713
  %715 = vrot.lane.b32.xlu0 %v114, 4
  %v716 = vpop.permute.xlu0 %715
  %717 = vrot.lane.b32.xlu0 %v115, 4
  %v718 = vpop.permute.xlu0 %717
  %719 = vrot.lane.b32.xlu0 %v116, 4
  %v720 = vpop.permute.xlu0 %719
  %721 = vrot.lane.b32.xlu0 %v117, 4
  %v722 = vpop.permute.xlu0 %721
  %723 = vrot.lane.b32.xlu0 %v118, 4
  %v724 = vpop.permute.xlu0 %723
  %725 = vrot.lane.b32.xlu0 %v119, 4
  %v726 = vpop.permute.xlu0 %725
  %727 = vrot.lane.b32.xlu0 %v120, 4
  %v728 = vpop.permute.xlu0 %727
  %729 = vrot.lane.b32.xlu0 %v121, 4
  %v730 = vpop.permute.xlu0 %729
  %731 = vrot.lane.b32.xlu0 %v122, 4
  %v732 = vpop.permute.xlu0 %731
  %733 = vrot.lane.b32.xlu0 %v123, 4
  %v734 = vpop.permute.xlu0 %733
  %735 = vrot.lane.b32.xlu0 %v124, 4
  %v736 = vpop.permute.xlu0 %735
  %737 = vrot.lane.b32.xlu0 %v125, 4
  %v738 = vpop.permute.xlu0 %737
  %739 = vrot.lane.b32.xlu0 %v126, 4
  %v740 = vpop.permute.xlu0 %739
  %741 = vrot.lane.b32.xlu0 %v127, 4
  %v742 = vpop.permute.xlu0 %741
  %743 = vrot.lane.b32.xlu0 %v128, 4
  %v744 = vpop.permute.xlu0 %743
  %745 = vrot.lane.b32.xlu0 %v129, 4
  %v746 = vpop.permute.xlu0 %745
  %747 = vrot.lane.b32.xlu0 %v130, 4
  %v748 = vpop.permute.xlu0 %747
  %749 = vrot.lane.b32.xlu0 %v131, 4
  %v750 = vpop.permute.xlu0 %749
  %751 = vrot.lane.b32.xlu0 %v132, 4
  %v752 = vpop.permute.xlu0 %751
  %753 = vrot.lane.b32.xlu0 %v133, 4
  %v754 = vpop.permute.xlu0 %753
  %755 = vrot.lane.b32.xlu0 %v134, 4
  %v756 = vpop.permute.xlu0 %755
  %757 = vrot.lane.b32.xlu0 %v135, 4
  %v758 = vpop.permute.xlu0 %757
  %759 = vrot.lane.b32.xlu0 %v136, 4
  %v760 = vpop.permute.xlu0 %759
  %761 = vrot.lane.b32.xlu0 %v137, 4
  %v762 = vpop.permute.xlu0 %761
  %763 = vrot.lane.b32.xlu0 %v138, 4
  %v764 = vpop.permute.xlu0 %763
  %765 = vrot.lane.b32.xlu0 %v139, 4
  %v766 = vpop.permute.xlu0 %765
  %767 = vrot.lane.b32.xlu0 %v140, 4
  %v768 = vpop.permute.xlu0 %767
  %769 = vrot.lane.b32.xlu0 %v141, 4
  %v770 = vpop.permute.xlu0 %769
  %771 = vrot.lane.b32.xlu0 %v142, 4
  %v772 = vpop.permute.xlu0 %771
  %773 = vrot.lane.b32.xlu0 %v143, 4
  %v774 = vpop.permute.xlu0 %773
  %775 = vrot.lane.b32.xlu0 %v144, 4
  %v776 = vpop.permute.xlu0 %775
  %777 = vrot.lane.b32.xlu0 %v145, 4
  %v778 = vpop.permute.xlu0 %777
  %779 = vrot.lane.b32.xlu0 %v146, 4
  %v780 = vpop.permute.xlu0 %779
  %781 = vrot.lane.b32.xlu0 %v147, 4
  %v782 = vpop.permute.xlu0 %781
  %783 = vrot.lane.b32.xlu0 %v148, 4
  %v784 = vpop.permute.xlu0 %783
  %785 = vrot.lane.b32.xlu0 %v149, 4
  %v786 = vpop.permute.xlu0 %785
  %787 = vrot.lane.b32.xlu0 %v150, 4
  %v788 = vpop.permute.xlu0 %787
  %789 = vrot.lane.b32.xlu0 %v151, 4
  %v790 = vpop.permute.xlu0 %789
  %791 = vrot.lane.b32.xlu0 %v152, 4
  %v792 = vpop.permute.xlu0 %791
  %793 = vrot.lane.b32.xlu0 %v153, 4
  %v794 = vpop.permute.xlu0 %793
  %795 = vrot.lane.b32.xlu0 %v154, 4
  %v796 = vpop.permute.xlu0 %795
  %925 = vrot.lane.b32.xlu0 %v155, 8
  %v926 = vpop.permute.xlu0 %925
  %927 = vrot.lane.b32.xlu0 %v156, 8
  %v928 = vpop.permute.xlu0 %927
  %929 = vrot.lane.b32.xlu0 %v157, 8
  %v930 = vpop.permute.xlu0 %929
  %931 = vrot.lane.b32.xlu0 %v158, 8
  %v932 = vpop.permute.xlu0 %931
  %933 = vrot.lane.b32.xlu0 %v159, 8
  %v934 = vpop.permute.xlu0 %933
  %935 = vrot.lane.b32.xlu0 %v160, 8
  %v936 = vpop.permute.xlu0 %935
  %937 = vrot.lane.b32.xlu0 %v161, 8
  %v938 = vpop.permute.xlu0 %937
  %939 = vrot.lane.b32.xlu0 %v162, 8
  %v940 = vpop.permute.xlu0 %939
  %941 = vrot.lane.b32.xlu0 %v163, 8
  %v942 = vpop.permute.xlu0 %941
  %943 = vrot.lane.b32.xlu0 %v164, 8
  %v944 = vpop.permute.xlu0 %943
  %945 = vrot.lane.b32.xlu0 %v165, 8
  %v946 = vpop.permute.xlu0 %945
  %947 = vrot.lane.b32.xlu0 %v166, 8
  %v948 = vpop.permute.xlu0 %947
  %949 = vrot.lane.b32.xlu0 %v167, 8
  %v950 = vpop.permute.xlu0 %949
  %951 = vrot.lane.b32.xlu0 %v168, 8
  %v952 = vpop.permute.xlu0 %951
  %953 = vrot.lane.b32.xlu0 %v169, 8
  %v954 = vpop.permute.xlu0 %953
  %955 = vrot.lane.b32.xlu0 %v170, 8
  %v956 = vpop.permute.xlu0 %955
  %957 = vrot.lane.b32.xlu0 %v171, 8
  %v958 = vpop.permute.xlu0 %957
  %959 = vrot.lane.b32.xlu0 %v172, 8
  %v960 = vpop.permute.xlu0 %959
  %961 = vrot.lane.b32.xlu0 %v173, 8
  %v962 = vpop.permute.xlu0 %961
  %963 = vrot.lane.b32.xlu0 %v174, 8
  %v964 = vpop.permute.xlu0 %963
  %965 = vrot.lane.b32.xlu0 %v175, 8
  %v966 = vpop.permute.xlu0 %965
  %967 = vrot.lane.b32.xlu0 %v176, 8
  %v968 = vpop.permute.xlu0 %967
  %969 = vrot.lane.b32.xlu0 %v177, 8
  %v970 = vpop.permute.xlu0 %969
  %971 = vrot.lane.b32.xlu0 %v178, 8
  %v972 = vpop.permute.xlu0 %971
  %973 = vrot.lane.b32.xlu0 %v179, 8
  %v974 = vpop.permute.xlu0 %973
  %975 = vrot.lane.b32.xlu0 %v180, 8
  %v976 = vpop.permute.xlu0 %975
  %977 = vrot.lane.b32.xlu0 %v181, 8
  %v978 = vpop.permute.xlu0 %977
  %979 = vrot.lane.b32.xlu0 %v182, 8
  %v980 = vpop.permute.xlu0 %979
  %981 = vrot.lane.b32.xlu0 %v183, 8
  %v982 = vpop.permute.xlu0 %981
  %983 = vrot.lane.b32.xlu0 %v184, 8
  %v984 = vpop.permute.xlu0 %983
  %985 = vrot.lane.b32.xlu0 %v185, 8
  %v986 = vpop.permute.xlu0 %985
  %987 = vrot.lane.b32.xlu0 %v186, 8
  %v988 = vpop.permute.xlu0 %987
  %989 = vrot.lane.b32.xlu0 %v187, 8
  %v990 = vpop.permute.xlu0 %989
  %991 = vrot.lane.b32.xlu0 %v188, 8
  %v992 = vpop.permute.xlu0 %991
  %993 = vrot.lane.b32.xlu0 %v189, 8
  %v994 = vpop.permute.xlu0 %993
  %995 = vrot.lane.b32.xlu0 %v190, 8
  %v996 = vpop.permute.xlu0 %995
  %997 = vrot.lane.b32.xlu0 %v191, 8
  %v998 = vpop.permute.xlu0 %997
  %999 = vrot.lane.b32.xlu0 %v192, 8
  %v1000 = vpop.permute.xlu0 %999
  %1001 = vrot.lane.b32.xlu0 %v193, 8
  %v1002 = vpop.permute.xlu0 %1001
  %1003 = vrot.lane.b32.xlu0 %v194, 8
  %v1004 = vpop.permute.xlu0 %1003
  %1005 = vrot.lane.b32.xlu0 %v195, 8
  %v1006 = vpop.permute.xlu0 %1005
  %1007 = vrot.lane.b32.xlu0 %v196, 8
  %v1008 = vpop.permute.xlu0 %1007
  %1009 = vrot.lane.b32.xlu0 %v197, 8
  %v1010 = vpop.permute.xlu0 %1009
  %1011 = vrot.lane.b32.xlu0 %v198, 8
  %v1012 = vpop.permute.xlu0 %1011
  %1013 = vrot.lane.b32.xlu0 %v199, 8
  %v1014 = vpop.permute.xlu0 %1013
  %1015 = vrot.lane.b32.xlu0 %v200, 8
  %v1016 = vpop.permute.xlu0 %1015
  %1017 = vrot.lane.b32.xlu0 %v201, 8
  %v1018 = vpop.permute.xlu0 %1017
  %1019 = vrot.lane.b32.xlu0 %v202, 8
  %v1020 = vpop.permute.xlu0 %1019
  %1021 = vrot.lane.b32.xlu0 %v203, 8
  %v1022 = vpop.permute.xlu0 %1021
  %1023 = vrot.lane.b32.xlu0 %v204, 8
  %v1024 = vpop.permute.xlu0 %1023
  %1025 = vrot.lane.b32.xlu0 %v205, 8
  %v1026 = vpop.permute.xlu0 %1025
  %1027 = vrot.lane.b32.xlu0 %v206, 8
  %v1028 = vpop.permute.xlu0 %1027
  %1029 = vrot.lane.b32.xlu0 %v207, 8
  %v1030 = vpop.permute.xlu0 %1029
  %1031 = vrot.lane.b32.xlu0 %v208, 8
  %v1032 = vpop.permute.xlu0 %1031
  %1033 = vrot.lane.b32.xlu0 %v209, 8
  %v1034 = vpop.permute.xlu0 %1033
  %1035 = vrot.lane.b32.xlu0 %v210, 8
  %v1036 = vpop.permute.xlu0 %1035
  %1037 = vrot.lane.b32.xlu0 %v211, 8
  %v1038 = vpop.permute.xlu0 %1037
  %1039 = vrot.lane.b32.xlu0 %v212, 8
  %v1040 = vpop.permute.xlu0 %1039
  %1041 = vrot.lane.b32.xlu0 %v213, 8
  %v1042 = vpop.permute.xlu0 %1041
  %1043 = vrot.lane.b32.xlu0 %v214, 8
  %v1044 = vpop.permute.xlu0 %1043
  %1045 = vrot.lane.b32.xlu0 %v215, 8
  %v1046 = vpop.permute.xlu0 %1045
  %1047 = vrot.lane.b32.xlu0 %v216, 8
  %v1048 = vpop.permute.xlu0 %1047
  %1049 = vrot.lane.b32.xlu0 %v217, 8
  %v1050 = vpop.permute.xlu0 %1049
  %1051 = vrot.lane.b32.xlu0 %v218, 8
  %v1052 = vpop.permute.xlu0 %1051
  %1181 = vrot.lane.b32.xlu0 %v220, 12
  %v1182 = vpop.permute.xlu0 %1181
  %1183 = vrot.lane.b32.xlu0 %v221, 12
  %v1184 = vpop.permute.xlu0 %1183
  %1185 = vrot.lane.b32.xlu0 %v222, 12
  %v1186 = vpop.permute.xlu0 %1185
  %1187 = vrot.lane.b32.xlu0 %v223, 12
  %v1188 = vpop.permute.xlu0 %1187
  %1189 = vrot.lane.b32.xlu0 %v224, 12
  %v1190 = vpop.permute.xlu0 %1189
  %1191 = vrot.lane.b32.xlu0 %v225, 12
  %v1192 = vpop.permute.xlu0 %1191
  %1193 = vrot.lane.b32.xlu0 %v226, 12
  %v1194 = vpop.permute.xlu0 %1193
  %1195 = vrot.lane.b32.xlu0 %v227, 12
  %v1196 = vpop.permute.xlu0 %1195
  %1197 = vrot.lane.b32.xlu0 %v228, 12
  %v1198 = vpop.permute.xlu0 %1197
  %1199 = vrot.lane.b32.xlu0 %v229, 12
  %v1200 = vpop.permute.xlu0 %1199
  %1201 = vrot.lane.b32.xlu0 %v230, 12
  %v1202 = vpop.permute.xlu0 %1201
  %1203 = vrot.lane.b32.xlu0 %v231, 12
  %v1204 = vpop.permute.xlu0 %1203
  %1205 = vrot.lane.b32.xlu0 %v232, 12
  %v1206 = vpop.permute.xlu0 %1205
  %1207 = vrot.lane.b32.xlu0 %v233, 12
  %v1208 = vpop.permute.xlu0 %1207
  %1209 = vrot.lane.b32.xlu0 %v234, 12
  %v1210 = vpop.permute.xlu0 %1209
  %1211 = vrot.lane.b32.xlu0 %v235, 12
  %v1212 = vpop.permute.xlu0 %1211
  %1213 = vrot.lane.b32.xlu0 %v236, 12
  %v1214 = vpop.permute.xlu0 %1213
  %1215 = vrot.lane.b32.xlu0 %v237, 12
  %v1216 = vpop.permute.xlu0 %1215
  %1217 = vrot.lane.b32.xlu0 %v238, 12
  %v1218 = vpop.permute.xlu0 %1217
  %1219 = vrot.lane.b32.xlu0 %v239, 12
  %v1220 = vpop.permute.xlu0 %1219
  %1221 = vrot.lane.b32.xlu0 %v240, 12
  %v1222 = vpop.permute.xlu0 %1221
  %1223 = vrot.lane.b32.xlu0 %v241, 12
  %v1224 = vpop.permute.xlu0 %1223
  %1225 = vrot.lane.b32.xlu0 %v242, 12
  %v1226 = vpop.permute.xlu0 %1225
  %1227 = vrot.lane.b32.xlu0 %v243, 12
  %v1228 = vpop.permute.xlu0 %1227
  %1229 = vrot.lane.b32.xlu0 %v244, 12
  %v1230 = vpop.permute.xlu0 %1229
  %1231 = vrot.lane.b32.xlu0 %v245, 12
  %v1232 = vpop.permute.xlu0 %1231
  %1233 = vrot.lane.b32.xlu0 %v246, 12
  %v1234 = vpop.permute.xlu0 %1233
  %1235 = vrot.lane.b32.xlu0 %v247, 12
  %v1236 = vpop.permute.xlu0 %1235
  %1237 = vrot.lane.b32.xlu0 %v248, 12
  %v1238 = vpop.permute.xlu0 %1237
  %1239 = vrot.lane.b32.xlu0 %v249, 12
  %v1240 = vpop.permute.xlu0 %1239
  %1241 = vrot.lane.b32.xlu0 %v250, 12
  %v1242 = vpop.permute.xlu0 %1241
  %1243 = vrot.lane.b32.xlu0 %v251, 12
  %v1244 = vpop.permute.xlu0 %1243
  %1245 = vrot.lane.b32.xlu0 %v252, 12
  %v1246 = vpop.permute.xlu0 %1245
  %1247 = vrot.lane.b32.xlu0 %v253, 12
  %v1248 = vpop.permute.xlu0 %1247
  %1249 = vrot.lane.b32.xlu0 %v254, 12
  %v1250 = vpop.permute.xlu0 %1249
  %1251 = vrot.lane.b32.xlu0 %v255, 12
  %v1252 = vpop.permute.xlu0 %1251
  %1253 = vrot.lane.b32.xlu0 %v256, 12
  %v1254 = vpop.permute.xlu0 %1253
  %1255 = vrot.lane.b32.xlu0 %v257, 12
  %v1256 = vpop.permute.xlu0 %1255
  %1257 = vrot.lane.b32.xlu0 %v258, 12
  %v1258 = vpop.permute.xlu0 %1257
  %1259 = vrot.lane.b32.xlu0 %v259, 12
  %v1260 = vpop.permute.xlu0 %1259
  %1261 = vrot.lane.b32.xlu0 %v260, 12
  %v1262 = vpop.permute.xlu0 %1261
  %1263 = vrot.lane.b32.xlu0 %v261, 12
  %v1264 = vpop.permute.xlu0 %1263
  %1265 = vrot.lane.b32.xlu0 %v262, 12
  %v1266 = vpop.permute.xlu0 %1265
  %1267 = vrot.lane.b32.xlu0 %v263, 12
  %v1268 = vpop.permute.xlu0 %1267
  %1269 = vrot.lane.b32.xlu0 %v264, 12
  %v1270 = vpop.permute.xlu0 %1269
  %1271 = vrot.lane.b32.xlu0 %v265, 12
  %v1272 = vpop.permute.xlu0 %1271
  %1273 = vrot.lane.b32.xlu0 %v266, 12
  %v1274 = vpop.permute.xlu0 %1273
  %1275 = vrot.lane.b32.xlu0 %v267, 12
  %v1276 = vpop.permute.xlu0 %1275
  %1277 = vrot.lane.b32.xlu0 %v268, 12
  %v1278 = vpop.permute.xlu0 %1277
  %1279 = vrot.lane.b32.xlu0 %v269, 12
  %v1280 = vpop.permute.xlu0 %1279
  %1281 = vrot.lane.b32.xlu0 %v270, 12
  %v1282 = vpop.permute.xlu0 %1281
  %1283 = vrot.lane.b32.xlu0 %v271, 12
  %v1284 = vpop.permute.xlu0 %1283
  %1285 = vrot.lane.b32.xlu0 %v272, 12
  %v1286 = vpop.permute.xlu0 %1285
  %1287 = vrot.lane.b32.xlu0 %v273, 12
  %v1288 = vpop.permute.xlu0 %1287
  %1289 = vrot.lane.b32.xlu0 %v274, 12
  %v1290 = vpop.permute.xlu0 %1289
  %1291 = vrot.lane.b32.xlu0 %v275, 12
  %v1292 = vpop.permute.xlu0 %1291
  %1293 = vrot.lane.b32.xlu0 %v276, 12
  %v1294 = vpop.permute.xlu0 %1293
  %1295 = vrot.lane.b32.xlu0 %v277, 12
  %v1296 = vpop.permute.xlu0 %1295
  %1297 = vrot.lane.b32.xlu0 %v278, 12
  %v1298 = vpop.permute.xlu0 %1297
  %1299 = vrot.lane.b32.xlu0 %v279, 12
  %v1300 = vpop.permute.xlu0 %1299
  %1301 = vrot.lane.b32.xlu0 %v280, 12
  %v1302 = vpop.permute.xlu0 %1301
  %1303 = vrot.lane.b32.xlu0 %v281, 12
  %v1304 = vpop.permute.xlu0 %1303
  %1305 = vrot.lane.b32.xlu0 %v282, 12
  %v1306 = vpop.permute.xlu0 %1305
  %1307 = vrot.lane.b32.xlu0 %v283, 12
  %v1308 = vpop.permute.xlu0 %1307
  %1437 = vrot.lane.b32.xlu0 %v284, 16
  %v1438 = vpop.permute.xlu0 %1437
  %1439 = vrot.lane.b32.xlu0 %v285, 16
  %v1440 = vpop.permute.xlu0 %1439
  %1441 = vrot.lane.b32.xlu0 %v286, 16
  %v1442 = vpop.permute.xlu0 %1441
  %1443 = vrot.lane.b32.xlu0 %v287, 16
  %v1444 = vpop.permute.xlu0 %1443
  %1445 = vrot.lane.b32.xlu0 %v288, 16
  %v1446 = vpop.permute.xlu0 %1445
  %1447 = vrot.lane.b32.xlu0 %v289, 16
  %v1448 = vpop.permute.xlu0 %1447
  %1449 = vrot.lane.b32.xlu0 %v290, 16
  %v1450 = vpop.permute.xlu0 %1449
  %1451 = vrot.lane.b32.xlu0 %v291, 16
  %v1452 = vpop.permute.xlu0 %1451
  %1453 = vrot.lane.b32.xlu0 %v292, 16
  %v1454 = vpop.permute.xlu0 %1453
  %1455 = vrot.lane.b32.xlu0 %v293, 16
  %v1456 = vpop.permute.xlu0 %1455
  %1457 = vrot.lane.b32.xlu0 %v294, 16
  %v1458 = vpop.permute.xlu0 %1457
  %1459 = vrot.lane.b32.xlu0 %v295, 16
  %v1460 = vpop.permute.xlu0 %1459
  %1461 = vrot.lane.b32.xlu0 %v296, 16
  %v1462 = vpop.permute.xlu0 %1461
  %1463 = vrot.lane.b32.xlu0 %v297, 16
  %v1464 = vpop.permute.xlu0 %1463
  %1465 = vrot.lane.b32.xlu0 %v298, 16
  %v1466 = vpop.permute.xlu0 %1465
  %1467 = vrot.lane.b32.xlu0 %v299, 16
  %v1468 = vpop.permute.xlu0 %1467
  %1469 = vrot.lane.b32.xlu0 %v300, 16
  %v1470 = vpop.permute.xlu0 %1469
  %1471 = vrot.lane.b32.xlu0 %v301, 16
  %v1472 = vpop.permute.xlu0 %1471
  %1473 = vrot.lane.b32.xlu0 %v302, 16
  %v1474 = vpop.permute.xlu0 %1473
  %1475 = vrot.lane.b32.xlu0 %v303, 16
  %v1476 = vpop.permute.xlu0 %1475
  %1477 = vrot.lane.b32.xlu0 %v304, 16
  %v1478 = vpop.permute.xlu0 %1477
  %1479 = vrot.lane.b32.xlu0 %v305, 16
  %v1480 = vpop.permute.xlu0 %1479
  %1481 = vrot.lane.b32.xlu0 %v306, 16
  %v1482 = vpop.permute.xlu0 %1481
  %1483 = vrot.lane.b32.xlu0 %v307, 16
  %v1484 = vpop.permute.xlu0 %1483
  %1485 = vrot.lane.b32.xlu0 %v308, 16
  %v1486 = vpop.permute.xlu0 %1485
  %1487 = vrot.lane.b32.xlu0 %v309, 16
  %v1488 = vpop.permute.xlu0 %1487
  %1489 = vrot.lane.b32.xlu0 %v310, 16
  %v1490 = vpop.permute.xlu0 %1489
  %1491 = vrot.lane.b32.xlu0 %v311, 16
  %v1492 = vpop.permute.xlu0 %1491
  %1493 = vrot.lane.b32.xlu0 %v312, 16
  %v1494 = vpop.permute.xlu0 %1493
  %1495 = vrot.lane.b32.xlu0 %v313, 16
  %v1496 = vpop.permute.xlu0 %1495
  %1497 = vrot.lane.b32.xlu0 %v314, 16
  %v1498 = vpop.permute.xlu0 %1497
  %1499 = vrot.lane.b32.xlu0 %v315, 16
  %v1500 = vpop.permute.xlu0 %1499
  %1501 = vrot.lane.b32.xlu0 %v316, 16
  %v1502 = vpop.permute.xlu0 %1501
  %1503 = vrot.lane.b32.xlu0 %v317, 16
  %v1504 = vpop.permute.xlu0 %1503
  %1505 = vrot.lane.b32.xlu0 %v318, 16
  %v1506 = vpop.permute.xlu0 %1505
  %1507 = vrot.lane.b32.xlu0 %v319, 16
  %v1508 = vpop.permute.xlu0 %1507
  %1509 = vrot.lane.b32.xlu0 %v320, 16
  %v1510 = vpop.permute.xlu0 %1509
  %1511 = vrot.lane.b32.xlu0 %v321, 16
  %v1512 = vpop.permute.xlu0 %1511
  %1513 = vrot.lane.b32.xlu0 %v322, 16
  %v1514 = vpop.permute.xlu0 %1513
  %1515 = vrot.lane.b32.xlu0 %v323, 16
  %v1516 = vpop.permute.xlu0 %1515
  %1517 = vrot.lane.b32.xlu0 %v324, 16
  %v1518 = vpop.permute.xlu0 %1517
  %1519 = vrot.lane.b32.xlu0 %v325, 16
  %v1520 = vpop.permute.xlu0 %1519
  %1521 = vrot.lane.b32.xlu0 %v326, 16
  %v1522 = vpop.permute.xlu0 %1521
  %1523 = vrot.lane.b32.xlu0 %v327, 16
  %v1524 = vpop.permute.xlu0 %1523
  %1525 = vrot.lane.b32.xlu0 %v328, 16
  %v1526 = vpop.permute.xlu0 %1525
  %1527 = vrot.lane.b32.xlu0 %v329, 16
  %v1528 = vpop.permute.xlu0 %1527
  %1529 = vrot.lane.b32.xlu0 %v330, 16
  %v1530 = vpop.permute.xlu0 %1529
  %1531 = vrot.lane.b32.xlu0 %v331, 16
  %v1532 = vpop.permute.xlu0 %1531
  %1533 = vrot.lane.b32.xlu0 %v332, 16
  %v1534 = vpop.permute.xlu0 %1533
  %1535 = vrot.lane.b32.xlu0 %v333, 16
  %v1536 = vpop.permute.xlu0 %1535
  %1537 = vrot.lane.b32.xlu0 %v334, 16
  %v1538 = vpop.permute.xlu0 %1537
  %1539 = vrot.lane.b32.xlu0 %v335, 16
  %v1540 = vpop.permute.xlu0 %1539
  %1541 = vrot.lane.b32.xlu0 %v336, 16
  %v1542 = vpop.permute.xlu0 %1541
  %1543 = vrot.lane.b32.xlu0 %v337, 16
  %v1544 = vpop.permute.xlu0 %1543
  %1545 = vrot.lane.b32.xlu0 %v338, 16
  %v1546 = vpop.permute.xlu0 %1545
  %1547 = vrot.lane.b32.xlu0 %v339, 16
  %v1548 = vpop.permute.xlu0 %1547
  %1549 = vrot.lane.b32.xlu0 %v340, 16
  %v1550 = vpop.permute.xlu0 %1549
  %1551 = vrot.lane.b32.xlu0 %v341, 16
  %v1552 = vpop.permute.xlu0 %1551
  %1553 = vrot.lane.b32.xlu0 %v342, 16
  %v1554 = vpop.permute.xlu0 %1553
  %1555 = vrot.lane.b32.xlu0 %v343, 16
  %v1556 = vpop.permute.xlu0 %1555
  %1557 = vrot.lane.b32.xlu0 %v344, 16
  %v1558 = vpop.permute.xlu0 %1557
  %1559 = vrot.lane.b32.xlu0 %v345, 16
  %v1560 = vpop.permute.xlu0 %1559
  %1561 = vrot.lane.b32.xlu0 %v346, 16
  %v1562 = vpop.permute.xlu0 %1561
  %1563 = vrot.lane.b32.xlu0 %v347, 16
  %v1564 = vpop.permute.xlu0 %1563
  %1693 = vrot.lane.b32.xlu0 %v348, 20
  %v1694 = vpop.permute.xlu0 %1693
  %1695 = vrot.lane.b32.xlu0 %v349, 20
  %v1696 = vpop.permute.xlu0 %1695
  %1697 = vrot.lane.b32.xlu0 %v350, 20
  %v1698 = vpop.permute.xlu0 %1697
  %1699 = vrot.lane.b32.xlu0 %v351, 20
  %v1700 = vpop.permute.xlu0 %1699
  %1701 = vrot.lane.b32.xlu0 %v352, 20
  %v1702 = vpop.permute.xlu0 %1701
  %1703 = vrot.lane.b32.xlu0 %v353, 20
  %v1704 = vpop.permute.xlu0 %1703
  %1705 = vrot.lane.b32.xlu0 %v354, 20
  %v1706 = vpop.permute.xlu0 %1705
  %1707 = vrot.lane.b32.xlu0 %v355, 20
  %v1708 = vpop.permute.xlu0 %1707
  %1709 = vrot.lane.b32.xlu0 %v356, 20
  %v1710 = vpop.permute.xlu0 %1709
  %1711 = vrot.lane.b32.xlu0 %v357, 20
  %v1712 = vpop.permute.xlu0 %1711
  %1713 = vrot.lane.b32.xlu0 %v358, 20
  %v1714 = vpop.permute.xlu0 %1713
  %1715 = vrot.lane.b32.xlu0 %v359, 20
  %v1716 = vpop.permute.xlu0 %1715
  %1717 = vrot.lane.b32.xlu0 %v360, 20
  %v1718 = vpop.permute.xlu0 %1717
  %1719 = vrot.lane.b32.xlu0 %v361, 20
  %v1720 = vpop.permute.xlu0 %1719
  %1721 = vrot.lane.b32.xlu0 %v362, 20
  %v1722 = vpop.permute.xlu0 %1721
  %1723 = vrot.lane.b32.xlu0 %v363, 20
  %v1724 = vpop.permute.xlu0 %1723
  %1725 = vrot.lane.b32.xlu0 %v364, 20
  %v1726 = vpop.permute.xlu0 %1725
  %1727 = vrot.lane.b32.xlu0 %v365, 20
  %v1728 = vpop.permute.xlu0 %1727
  %1729 = vrot.lane.b32.xlu0 %v366, 20
  %v1730 = vpop.permute.xlu0 %1729
  %1731 = vrot.lane.b32.xlu0 %v367, 20
  %v1732 = vpop.permute.xlu0 %1731
  %1733 = vrot.lane.b32.xlu0 %v368, 20
  %v1734 = vpop.permute.xlu0 %1733
  %1735 = vrot.lane.b32.xlu0 %v369, 20
  %v1736 = vpop.permute.xlu0 %1735
  %1737 = vrot.lane.b32.xlu0 %v370, 20
  %v1738 = vpop.permute.xlu0 %1737
  %1739 = vrot.lane.b32.xlu0 %v371, 20
  %v1740 = vpop.permute.xlu0 %1739
  %1741 = vrot.lane.b32.xlu0 %v372, 20
  %v1742 = vpop.permute.xlu0 %1741
  %1743 = vrot.lane.b32.xlu0 %v373, 20
  %v1744 = vpop.permute.xlu0 %1743
  %1745 = vrot.lane.b32.xlu0 %v374, 20
  %v1746 = vpop.permute.xlu0 %1745
  %1747 = vrot.lane.b32.xlu0 %v375, 20
  %v1748 = vpop.permute.xlu0 %1747
  %1749 = vrot.lane.b32.xlu0 %v376, 20
  %v1750 = vpop.permute.xlu0 %1749
  %1751 = vrot.lane.b32.xlu0 %v377, 20
  %v1752 = vpop.permute.xlu0 %1751
  %1753 = vrot.lane.b32.xlu0 %v378, 20
  %v1754 = vpop.permute.xlu0 %1753
  %1755 = vrot.lane.b32.xlu0 %v379, 20
  %v1756 = vpop.permute.xlu0 %1755
  %1757 = vrot.lane.b32.xlu0 %v380, 20
  %v1758 = vpop.permute.xlu0 %1757
  %1759 = vrot.lane.b32.xlu0 %v381, 20
  %v1760 = vpop.permute.xlu0 %1759
  %1761 = vrot.lane.b32.xlu0 %v382, 20
  %v1762 = vpop.permute.xlu0 %1761
  %1763 = vrot.lane.b32.xlu0 %v383, 20
  %v1764 = vpop.permute.xlu0 %1763
  %1765 = vrot.lane.b32.xlu0 %v384, 20
  %v1766 = vpop.permute.xlu0 %1765
  %1767 = vrot.lane.b32.xlu0 %v385, 20
  %v1768 = vpop.permute.xlu0 %1767
  %1769 = vrot.lane.b32.xlu0 %v386, 20
  %v1770 = vpop.permute.xlu0 %1769
  %1771 = vrot.lane.b32.xlu0 %v387, 20
  %v1772 = vpop.permute.xlu0 %1771
  %1773 = vrot.lane.b32.xlu0 %v388, 20
  %v1774 = vpop.permute.xlu0 %1773
  %1775 = vrot.lane.b32.xlu0 %v389, 20
  %v1776 = vpop.permute.xlu0 %1775
  %1777 = vrot.lane.b32.xlu0 %v390, 20
  %v1778 = vpop.permute.xlu0 %1777
  %1779 = vrot.lane.b32.xlu0 %v391, 20
  %v1780 = vpop.permute.xlu0 %1779
  %1781 = vrot.lane.b32.xlu0 %v392, 20
  %v1782 = vpop.permute.xlu0 %1781
  %1783 = vrot.lane.b32.xlu0 %v393, 20
  %v1784 = vpop.permute.xlu0 %1783
  %1785 = vrot.lane.b32.xlu0 %v394, 20
  %v1786 = vpop.permute.xlu0 %1785
  %1787 = vrot.lane.b32.xlu0 %v395, 20
  %v1788 = vpop.permute.xlu0 %1787
  %1789 = vrot.lane.b32.xlu0 %v396, 20
  %v1790 = vpop.permute.xlu0 %1789
  %1791 = vrot.lane.b32.xlu0 %v397, 20
  %v1792 = vpop.permute.xlu0 %1791
  %1793 = vrot.lane.b32.xlu0 %v398, 20
  %v1794 = vpop.permute.xlu0 %1793
  %1795 = vrot.lane.b32.xlu0 %v399, 20
  %v1796 = vpop.permute.xlu0 %1795
  %1797 = vrot.lane.b32.xlu0 %v400, 20
  %v1798 = vpop.permute.xlu0 %1797
  %1799 = vrot.lane.b32.xlu0 %v401, 20
  %v1800 = vpop.permute.xlu0 %1799
  %1801 = vrot.lane.b32.xlu0 %v402, 20
  %v1802 = vpop.permute.xlu0 %1801
  %1803 = vrot.lane.b32.xlu0 %v403, 20
  %v1804 = vpop.permute.xlu0 %1803
  %1805 = vrot.lane.b32.xlu0 %v404, 20
  %v1806 = vpop.permute.xlu0 %1805
  %1807 = vrot.lane.b32.xlu0 %v405, 20
  %v1808 = vpop.permute.xlu0 %1807
  %1809 = vrot.lane.b32.xlu0 %v406, 20
  %v1810 = vpop.permute.xlu0 %1809
  %1811 = vrot.lane.b32.xlu0 %v407, 20
  %v1812 = vpop.permute.xlu0 %1811
  %1813 = vrot.lane.b32.xlu0 %v408, 20
  %v1814 = vpop.permute.xlu0 %1813
  %1815 = vrot.lane.b32.xlu0 %v409, 20
  %v1816 = vpop.permute.xlu0 %1815
  %1817 = vrot.lane.b32.xlu0 %v410, 20
  %v1818 = vpop.permute.xlu0 %1817
  %1819 = vrot.lane.b32.xlu0 %v411, 20
  %v1820 = vpop.permute.xlu0 %1819
  %1949 = vrot.lane.b32.xlu0 %v413, 24
  %v1950 = vpop.permute.xlu0 %1949
  %1951 = vrot.lane.b32.xlu0 %v414, 24
  %v1952 = vpop.permute.xlu0 %1951
  %1953 = vrot.lane.b32.xlu0 %v415, 24
  %v1954 = vpop.permute.xlu0 %1953
  %1955 = vrot.lane.b32.xlu0 %v416, 24
  %v1956 = vpop.permute.xlu0 %1955
  %1957 = vrot.lane.b32.xlu0 %v417, 24
  %v1958 = vpop.permute.xlu0 %1957
  %1959 = vrot.lane.b32.xlu0 %v418, 24
  %v1960 = vpop.permute.xlu0 %1959
  %1961 = vrot.lane.b32.xlu0 %v419, 24
  %v1962 = vpop.permute.xlu0 %1961
  %1963 = vrot.lane.b32.xlu0 %v420, 24
  %v1964 = vpop.permute.xlu0 %1963
  %1965 = vrot.lane.b32.xlu0 %v421, 24
  %v1966 = vpop.permute.xlu0 %1965
  %1967 = vrot.lane.b32.xlu0 %v422, 24
  %v1968 = vpop.permute.xlu0 %1967
  %1969 = vrot.lane.b32.xlu0 %v423, 24
  %v1970 = vpop.permute.xlu0 %1969
  %1971 = vrot.lane.b32.xlu0 %v424, 24
  %v1972 = vpop.permute.xlu0 %1971
  %1973 = vrot.lane.b32.xlu0 %v425, 24
  %v1974 = vpop.permute.xlu0 %1973
  %1975 = vrot.lane.b32.xlu0 %v426, 24
  %v1976 = vpop.permute.xlu0 %1975
  %1977 = vrot.lane.b32.xlu0 %v427, 24
  %v1978 = vpop.permute.xlu0 %1977
  %1979 = vrot.lane.b32.xlu0 %v428, 24
  %v1980 = vpop.permute.xlu0 %1979
  %1981 = vrot.lane.b32.xlu0 %v429, 24
  %v1982 = vpop.permute.xlu0 %1981
  %1983 = vrot.lane.b32.xlu0 %v430, 24
  %v1984 = vpop.permute.xlu0 %1983
  %1985 = vrot.lane.b32.xlu0 %v431, 24
  %v1986 = vpop.permute.xlu0 %1985
  %1987 = vrot.lane.b32.xlu0 %v432, 24
  %v1988 = vpop.permute.xlu0 %1987
  %1989 = vrot.lane.b32.xlu0 %v433, 24
  %v1990 = vpop.permute.xlu0 %1989
  %1991 = vrot.lane.b32.xlu0 %v434, 24
  %v1992 = vpop.permute.xlu0 %1991
  %1993 = vrot.lane.b32.xlu0 %v435, 24
  %v1994 = vpop.permute.xlu0 %1993
  %1995 = vrot.lane.b32.xlu0 %v436, 24
  %v1996 = vpop.permute.xlu0 %1995
  %1997 = vrot.lane.b32.xlu0 %v437, 24
  %v1998 = vpop.permute.xlu0 %1997
  %1999 = vrot.lane.b32.xlu0 %v438, 24
  %v2000 = vpop.permute.xlu0 %1999
  %2001 = vrot.lane.b32.xlu0 %v439, 24
  %v2002 = vpop.permute.xlu0 %2001
  %2003 = vrot.lane.b32.xlu0 %v440, 24
  %v2004 = vpop.permute.xlu0 %2003
  %2005 = vrot.lane.b32.xlu0 %v441, 24
  %v2006 = vpop.permute.xlu0 %2005
  %2007 = vrot.lane.b32.xlu0 %v442, 24
  %v2008 = vpop.permute.xlu0 %2007
  %2009 = vrot.lane.b32.xlu0 %v443, 24
  %v2010 = vpop.permute.xlu0 %2009
  %2011 = vrot.lane.b32.xlu0 %v444, 24
  %v2012 = vpop.permute.xlu0 %2011
  %2013 = vrot.lane.b32.xlu0 %v445, 24
  %v2014 = vpop.permute.xlu0 %2013
  %2015 = vrot.lane.b32.xlu0 %v446, 24
  %v2016 = vpop.permute.xlu0 %2015
  %2017 = vrot.lane.b32.xlu0 %v447, 24
  %v2018 = vpop.permute.xlu0 %2017
  %2019 = vrot.lane.b32.xlu0 %v448, 24
  %v2020 = vpop.permute.xlu0 %2019
  %2021 = vrot.lane.b32.xlu0 %v449, 24
  %v2022 = vpop.permute.xlu0 %2021
  %2023 = vrot.lane.b32.xlu0 %v450, 24
  %v2024 = vpop.permute.xlu0 %2023
  %2025 = vrot.lane.b32.xlu0 %v451, 24
  %v2026 = vpop.permute.xlu0 %2025
  %2027 = vrot.lane.b32.xlu0 %v452, 24
  %v2028 = vpop.permute.xlu0 %2027
  %2029 = vrot.lane.b32.xlu0 %v453, 24
  %v2030 = vpop.permute.xlu0 %2029
  %2031 = vrot.lane.b32.xlu0 %v454, 24
  %v2032 = vpop.permute.xlu0 %2031
  %2033 = vrot.lane.b32.xlu0 %v455, 24
  %v2034 = vpop.permute.xlu0 %2033
  %2035 = vrot.lane.b32.xlu0 %v456, 24
  %v2036 = vpop.permute.xlu0 %2035
  %2037 = vrot.lane.b32.xlu0 %v457, 24
  %v2038 = vpop.permute.xlu0 %2037
  %2039 = vrot.lane.b32.xlu0 %v458, 24
  %v2040 = vpop.permute.xlu0 %2039
  %2041 = vrot.lane.b32.xlu0 %v459, 24
  %v2042 = vpop.permute.xlu0 %2041
  %2043 = vrot.lane.b32.xlu0 %v460, 24
  %v2044 = vpop.permute.xlu0 %2043
  %2045 = vrot.lane.b32.xlu0 %v461, 24
  %v2046 = vpop.permute.xlu0 %2045
  %2047 = vrot.lane.b32.xlu0 %v462, 24
  %v2048 = vpop.permute.xlu0 %2047
  %2049 = vrot.lane.b32.xlu0 %v463, 24
  %v2050 = vpop.permute.xlu0 %2049
  %2051 = vrot.lane.b32.xlu0 %v464, 24
  %v2052 = vpop.permute.xlu0 %2051
  %2053 = vrot.lane.b32.xlu0 %v465, 24
  %v2054 = vpop.permute.xlu0 %2053
  %2055 = vrot.lane.b32.xlu0 %v466, 24
  %v2056 = vpop.permute.xlu0 %2055
  %2057 = vrot.lane.b32.xlu0 %v467, 24
  %v2058 = vpop.permute.xlu0 %2057
  %2059 = vrot.lane.b32.xlu0 %v468, 24
  %v2060 = vpop.permute.xlu0 %2059
  %2061 = vrot.lane.b32.xlu0 %v469, 24
  %v2062 = vpop.permute.xlu0 %2061
  %2063 = vrot.lane.b32.xlu0 %v470, 24
  %v2064 = vpop.permute.xlu0 %2063
  %2065 = vrot.lane.b32.xlu0 %v471, 24
  %v2066 = vpop.permute.xlu0 %2065
  %2067 = vrot.lane.b32.xlu0 %v472, 24
  %v2068 = vpop.permute.xlu0 %2067
  %2069 = vrot.lane.b32.xlu0 %v473, 24
  %v2070 = vpop.permute.xlu0 %2069
  %2071 = vrot.lane.b32.xlu0 %v474, 24
  %v2072 = vpop.permute.xlu0 %2071
  %2073 = vrot.lane.b32.xlu0 %v475, 24
  %v2074 = vpop.permute.xlu0 %2073
  %2075 = vrot.lane.b32.xlu0 %v476, 24
  %v2076 = vpop.permute.xlu0 %2075
  %2205 = vrot.lane.b32.xlu0 %v477, 28
  %v2206 = vpop.permute.xlu0 %2205
  %2207 = vrot.lane.b32.xlu0 %v478, 28
  %v2208 = vpop.permute.xlu0 %2207
  %2209 = vrot.lane.b32.xlu0 %v479, 28
  %v2210 = vpop.permute.xlu0 %2209
  %2211 = vrot.lane.b32.xlu0 %v480, 28
  %v2212 = vpop.permute.xlu0 %2211
  %2213 = vrot.lane.b32.xlu0 %v481, 28
  %v2214 = vpop.permute.xlu0 %2213
  %2215 = vrot.lane.b32.xlu0 %v482, 28
  %v2216 = vpop.permute.xlu0 %2215
  %2217 = vrot.lane.b32.xlu0 %v483, 28
  %v2218 = vpop.permute.xlu0 %2217
  %2219 = vrot.lane.b32.xlu0 %v484, 28
  %v2220 = vpop.permute.xlu0 %2219
  %2221 = vrot.lane.b32.xlu0 %v485, 28
  %v2222 = vpop.permute.xlu0 %2221
  %2223 = vrot.lane.b32.xlu0 %v486, 28
  %v2224 = vpop.permute.xlu0 %2223
  %2225 = vrot.lane.b32.xlu0 %v487, 28
  %v2226 = vpop.permute.xlu0 %2225
  %2227 = vrot.lane.b32.xlu0 %v488, 28
  %v2228 = vpop.permute.xlu0 %2227
  %2229 = vrot.lane.b32.xlu0 %v489, 28
  %v2230 = vpop.permute.xlu0 %2229
  %2231 = vrot.lane.b32.xlu0 %v490, 28
  %v2232 = vpop.permute.xlu0 %2231
  %2233 = vrot.lane.b32.xlu0 %v491, 28
  %v2234 = vpop.permute.xlu0 %2233
  %2235 = vrot.lane.b32.xlu0 %v492, 28
  %v2236 = vpop.permute.xlu0 %2235
  %2237 = vrot.lane.b32.xlu0 %v493, 28
  %v2238 = vpop.permute.xlu0 %2237
  %2239 = vrot.lane.b32.xlu0 %v494, 28
  %v2240 = vpop.permute.xlu0 %2239
  %2241 = vrot.lane.b32.xlu0 %v495, 28
  %v2242 = vpop.permute.xlu0 %2241
  %2243 = vrot.lane.b32.xlu0 %v496, 28
  %v2244 = vpop.permute.xlu0 %2243
  %2245 = vrot.lane.b32.xlu0 %v497, 28
  %v2246 = vpop.permute.xlu0 %2245
  %2247 = vrot.lane.b32.xlu0 %v498, 28
  %v2248 = vpop.permute.xlu0 %2247
  %2249 = vrot.lane.b32.xlu0 %v499, 28
  %v2250 = vpop.permute.xlu0 %2249
  %2251 = vrot.lane.b32.xlu0 %v500, 28
  %v2252 = vpop.permute.xlu0 %2251
  %2253 = vrot.lane.b32.xlu0 %v501, 28
  %v2254 = vpop.permute.xlu0 %2253
  %2255 = vrot.lane.b32.xlu0 %v502, 28
  %v2256 = vpop.permute.xlu0 %2255
  %2257 = vrot.lane.b32.xlu0 %v503, 28
  %v2258 = vpop.permute.xlu0 %2257
  %2259 = vrot.lane.b32.xlu0 %v504, 28
  %v2260 = vpop.permute.xlu0 %2259
  %2261 = vrot.lane.b32.xlu0 %v505, 28
  %v2262 = vpop.permute.xlu0 %2261
  %2263 = vrot.lane.b32.xlu0 %v506, 28
  %v2264 = vpop.permute.xlu0 %2263
  %2265 = vrot.lane.b32.xlu0 %v507, 28
  %v2266 = vpop.permute.xlu0 %2265
  %2267 = vrot.lane.b32.xlu0 %v508, 28
  %v2268 = vpop.permute.xlu0 %2267
  %2269 = vrot.lane.b32.xlu0 %v509, 28
  %v2270 = vpop.permute.xlu0 %2269
  %2271 = vrot.lane.b32.xlu0 %v510, 28
  %v2272 = vpop.permute.xlu0 %2271
  %2273 = vrot.lane.b32.xlu0 %v511, 28
  %v2274 = vpop.permute.xlu0 %2273
  %2275 = vrot.lane.b32.xlu0 %v512, 28
  %v2276 = vpop.permute.xlu0 %2275
  %2277 = vrot.lane.b32.xlu0 %v513, 28
  %v2278 = vpop.permute.xlu0 %2277
  %2279 = vrot.lane.b32.xlu0 %v514, 28
  %v2280 = vpop.permute.xlu0 %2279
  %2281 = vrot.lane.b32.xlu0 %v515, 28
  %v2282 = vpop.permute.xlu0 %2281
  %2283 = vrot.lane.b32.xlu0 %v516, 28
  %v2284 = vpop.permute.xlu0 %2283
  %2285 = vrot.lane.b32.xlu0 %v517, 28
  %v2286 = vpop.permute.xlu0 %2285
  %2287 = vrot.lane.b32.xlu0 %v518, 28
  %v2288 = vpop.permute.xlu0 %2287
  %2289 = vrot.lane.b32.xlu0 %v519, 28
  %v2290 = vpop.permute.xlu0 %2289
  %2291 = vrot.lane.b32.xlu0 %v520, 28
  %v2292 = vpop.permute.xlu0 %2291
  %2293 = vrot.lane.b32.xlu0 %v521, 28
  %v2294 = vpop.permute.xlu0 %2293
  %2295 = vrot.lane.b32.xlu0 %v522, 28
  %v2296 = vpop.permute.xlu0 %2295
  %2297 = vrot.lane.b32.xlu0 %v523, 28
  %v2298 = vpop.permute.xlu0 %2297
  %2299 = vrot.lane.b32.xlu0 %v524, 28
  %v2300 = vpop.permute.xlu0 %2299
  %2301 = vrot.lane.b32.xlu0 %v525, 28
  %v2302 = vpop.permute.xlu0 %2301
  %2303 = vrot.lane.b32.xlu0 %v526, 28
  %v2304 = vpop.permute.xlu0 %2303
  %2305 = vrot.lane.b32.xlu0 %v527, 28
  %v2306 = vpop.permute.xlu0 %2305
  %2307 = vrot.lane.b32.xlu0 %v528, 28
  %v2308 = vpop.permute.xlu0 %2307
  %2309 = vrot.lane.b32.xlu0 %v529, 28
  %v2310 = vpop.permute.xlu0 %2309
  %2311 = vrot.lane.b32.xlu0 %v530, 28
  %v2312 = vpop.permute.xlu0 %2311
  %2313 = vrot.lane.b32.xlu0 %v531, 28
  %v2314 = vpop.permute.xlu0 %2313
  %2315 = vrot.lane.b32.xlu0 %v532, 28
  %v2316 = vpop.permute.xlu0 %2315
  %2317 = vrot.lane.b32.xlu0 %v533, 28
  %v2318 = vpop.permute.xlu0 %2317
  %2319 = vrot.lane.b32.xlu0 %v534, 28
  %v2320 = vpop.permute.xlu0 %2319
  %2321 = vrot.lane.b32.xlu0 %v535, 28
  %v2322 = vpop.permute.xlu0 %2321
  %2323 = vrot.lane.b32.xlu0 %v536, 28
  %v2324 = vpop.permute.xlu0 %2323
  %2325 = vrot.lane.b32.xlu0 %v537, 28
  %v2326 = vpop.permute.xlu0 %2325
  %2327 = vrot.lane.b32.xlu0 %v538, 28
  %v2328 = vpop.permute.xlu0 %2327
  %2329 = vrot.lane.b32.xlu0 %v539, 28
  %v2330 = vpop.permute.xlu0 %2329
  %2331 = vrot.lane.b32.xlu0 %v540, 28
  %v2332 = vpop.permute.xlu0 %2331
  %2461 = vrot.lane.b32.xlu0 %v541, 32
  %v2462 = vpop.permute.xlu0 %2461
  %2463 = vrot.lane.b32.xlu0 %v542, 32
  %v2464 = vpop.permute.xlu0 %2463
  %2465 = vrot.lane.b32.xlu0 %v543, 32
  %v2466 = vpop.permute.xlu0 %2465
  %2467 = vrot.lane.b32.xlu0 %v544, 32
  %v2468 = vpop.permute.xlu0 %2467
  %2469 = vrot.lane.b32.xlu0 %v545, 32
  %v2470 = vpop.permute.xlu0 %2469
  %2471 = vrot.lane.b32.xlu0 %v546, 32
  %v2472 = vpop.permute.xlu0 %2471
  %2473 = vrot.lane.b32.xlu0 %v547, 32
  %v2474 = vpop.permute.xlu0 %2473
  %2475 = vrot.lane.b32.xlu0 %v548, 32
  %v2476 = vpop.permute.xlu0 %2475
  %2477 = vrot.lane.b32.xlu0 %v549, 32
  %v2478 = vpop.permute.xlu0 %2477
  %2479 = vrot.lane.b32.xlu0 %v550, 32
  %v2480 = vpop.permute.xlu0 %2479
  %2481 = vrot.lane.b32.xlu0 %v551, 32
  %v2482 = vpop.permute.xlu0 %2481
  %2483 = vrot.lane.b32.xlu0 %v552, 32
  %v2484 = vpop.permute.xlu0 %2483
  %2485 = vrot.lane.b32.xlu0 %v553, 32
  %v2486 = vpop.permute.xlu0 %2485
  %2487 = vrot.lane.b32.xlu0 %v554, 32
  %v2488 = vpop.permute.xlu0 %2487
  %2489 = vrot.lane.b32.xlu0 %v555, 32
  %v2490 = vpop.permute.xlu0 %2489
  %2491 = vrot.lane.b32.xlu0 %v556, 32
  %v2492 = vpop.permute.xlu0 %2491
  %2493 = vrot.lane.b32.xlu0 %v557, 32
  %v2494 = vpop.permute.xlu0 %2493
  %2495 = vrot.lane.b32.xlu0 %v558, 32
  %v2496 = vpop.permute.xlu0 %2495
  %2497 = vrot.lane.b32.xlu0 %v559, 32
  %v2498 = vpop.permute.xlu0 %2497
  %2499 = vrot.lane.b32.xlu0 %v560, 32
  %v2500 = vpop.permute.xlu0 %2499
  %2501 = vrot.lane.b32.xlu0 %v561, 32
  %v2502 = vpop.permute.xlu0 %2501
  %2503 = vrot.lane.b32.xlu0 %v562, 32
  %v2504 = vpop.permute.xlu0 %2503
  %2505 = vrot.lane.b32.xlu0 %v563, 32
  %v2506 = vpop.permute.xlu0 %2505
  %2507 = vrot.lane.b32.xlu0 %v564, 32
  %v2508 = vpop.permute.xlu0 %2507
  %2509 = vrot.lane.b32.xlu0 %v565, 32
  %v2510 = vpop.permute.xlu0 %2509
  %2511 = vrot.lane.b32.xlu0 %v566, 32
  %v2512 = vpop.permute.xlu0 %2511
  %2513 = vrot.lane.b32.xlu0 %v567, 32
  %v2514 = vpop.permute.xlu0 %2513
  %2515 = vrot.lane.b32.xlu0 %v568, 32
  %v2516 = vpop.permute.xlu0 %2515
  %2517 = vrot.lane.b32.xlu0 %v569, 32
  %v2518 = vpop.permute.xlu0 %2517
  %2519 = vrot.lane.b32.xlu0 %v570, 32
  %v2520 = vpop.permute.xlu0 %2519
  %2521 = vrot.lane.b32.xlu0 %v571, 32
  %v2522 = vpop.permute.xlu0 %2521
  %2523 = vrot.lane.b32.xlu0 %v572, 32
  %v2524 = vpop.permute.xlu0 %2523
  %2525 = vrot.lane.b32.xlu0 %v573, 32
  %v2526 = vpop.permute.xlu0 %2525
  %2527 = vrot.lane.b32.xlu0 %v574, 32
  %v2528 = vpop.permute.xlu0 %2527
  %2529 = vrot.lane.b32.xlu0 %v575, 32
  %v2530 = vpop.permute.xlu0 %2529
  %2531 = vrot.lane.b32.xlu0 %v576, 32
  %v2532 = vpop.permute.xlu0 %2531
  %2533 = vrot.lane.b32.xlu0 %v577, 32
  %v2534 = vpop.permute.xlu0 %2533
  %2535 = vrot.lane.b32.xlu0 %v578, 32
  %v2536 = vpop.permute.xlu0 %2535
  %2537 = vrot.lane.b32.xlu0 %v579, 32
  %v2538 = vpop.permute.xlu0 %2537
  %2539 = vrot.lane.b32.xlu0 %v580, 32
  %v2540 = vpop.permute.xlu0 %2539
  %2541 = vrot.lane.b32.xlu0 %v581, 32
  %v2542 = vpop.permute.xlu0 %2541
  %2543 = vrot.lane.b32.xlu0 %v582, 32
  %v2544 = vpop.permute.xlu0 %2543
  %2545 = vrot.lane.b32.xlu0 %v583, 32
  %v2546 = vpop.permute.xlu0 %2545
  %2547 = vrot.lane.b32.xlu0 %v584, 32
  %v2548 = vpop.permute.xlu0 %2547
  %2549 = vrot.lane.b32.xlu0 %v585, 32
  %v2550 = vpop.permute.xlu0 %2549
  %2551 = vrot.lane.b32.xlu0 %v586, 32
  %v2552 = vpop.permute.xlu0 %2551
  %2553 = vrot.lane.b32.xlu0 %v587, 32
  %v2554 = vpop.permute.xlu0 %2553
  %2555 = vrot.lane.b32.xlu0 %v588, 32
  %v2556 = vpop.permute.xlu0 %2555
  %2557 = vrot.lane.b32.xlu0 %v589, 32
  %v2558 = vpop.permute.xlu0 %2557
  %2559 = vrot.lane.b32.xlu0 %v590, 32
  %v2560 = vpop.permute.xlu0 %2559
  %2561 = vrot.lane.b32.xlu0 %v591, 32
  %v2562 = vpop.permute.xlu0 %2561
  %2563 = vrot.lane.b32.xlu0 %v592, 32
  %v2564 = vpop.permute.xlu0 %2563
  %2565 = vrot.lane.b32.xlu0 %v593, 32
  %v2566 = vpop.permute.xlu0 %2565
  %2567 = vrot.lane.b32.xlu0 %v594, 32
  %v2568 = vpop.permute.xlu0 %2567
  %2569 = vrot.lane.b32.xlu0 %v595, 32
  %v2570 = vpop.permute.xlu0 %2569
  %2571 = vrot.lane.b32.xlu0 %v596, 32
  %v2572 = vpop.permute.xlu0 %2571
  %2573 = vrot.lane.b32.xlu0 %v597, 32
  %v2574 = vpop.permute.xlu0 %2573
  %2575 = vrot.lane.b32.xlu0 %v598, 32
  %v2576 = vpop.permute.xlu0 %2575
  %2577 = vrot.lane.b32.xlu0 %v599, 32
  %v2578 = vpop.permute.xlu0 %2577
  %2579 = vrot.lane.b32.xlu0 %v600, 32
  %v2580 = vpop.permute.xlu0 %2579
  %2581 = vrot.lane.b32.xlu0 %v601, 32
  %v2582 = vpop.permute.xlu0 %2581
  %2583 = vrot.lane.b32.xlu0 %v602, 32
  %v2584 = vpop.permute.xlu0 %2583
  %2585 = vrot.lane.b32.xlu0 %v603, 32
  %v2586 = vpop.permute.xlu0 %2585
  %2587 = vrot.lane.b32.xlu0 %v604, 32
  %v2588 = vpop.permute.xlu0 %2587
  %vm2653 = vcmask 31744
  %v2654 = vsel %vm2653, %v27, %v670
  %v2655 = vsel %vm2653, %v28, %v672
  %v2656 = vsel %vm2653, %v29, %v674
  %v2657 = vsel %vm2653, %v30, %v676
  %v2658 = vsel %vm2653, %v31, %v678
  %v2659 = vsel %vm2653, %v32, %v680
  %v2660 = vsel %vm2653, %v33, %v682
  %v2661 = vsel %vm2653, %v34, %v684
  %v2662 = vsel %vm2653, %v35, %v686
  %v2663 = vsel %vm2653, %v36, %v688
  %v2664 = vsel %vm2653, %v37, %v690
  %v2665 = vsel %vm2653, %v38, %v692
  %v2666 = vsel %vm2653, %v39, %v694
  %v2667 = vsel %vm2653, %v40, %v696
  %v2668 = vsel %vm2653, %v41, %v698
  %v2669 = vsel %vm2653, %v42, %v700
  %v2670 = vsel %vm2653, %v43, %v702
  %v2671 = vsel %vm2653, %v44, %v704
  %v2672 = vsel %vm2653, %v45, %v706
  %v2673 = vsel %vm2653, %v46, %v708
  %v2674 = vsel %vm2653, %v47, %v710
  %v2675 = vsel %vm2653, %v48, %v712
  %v2676 = vsel %vm2653, %v49, %v714
  %v2677 = vsel %vm2653, %v50, %v716
  %v2678 = vsel %vm2653, %v51, %v718
  %v2679 = vsel %vm2653, %v52, %v720
  %v2680 = vsel %vm2653, %v53, %v722
  %v2681 = vsel %vm2653, %v54, %v724
  %v2682 = vsel %vm2653, %v55, %v726
  %v2683 = vsel %vm2653, %v56, %v728
  %v2684 = vsel %vm2653, %v57, %v730
  %v2685 = vsel %vm2653, %v58, %v732
  %v2686 = vsel %vm2653, %v59, %v734
  %v2687 = vsel %vm2653, %v60, %v736
  %v2688 = vsel %vm2653, %v61, %v738
  %v2689 = vsel %vm2653, %v62, %v740
  %v2690 = vsel %vm2653, %v63, %v742
  %v2691 = vsel %vm2653, %v64, %v744
  %v2692 = vsel %vm2653, %v65, %v746
  %v2693 = vsel %vm2653, %v66, %v748
  %v2694 = vsel %vm2653, %v67, %v750
  %v2695 = vsel %vm2653, %v68, %v752
  %v2696 = vsel %vm2653, %v69, %v754
  %v2697 = vsel %vm2653, %v70, %v756
  %v2698 = vsel %vm2653, %v71, %v758
  %v2699 = vsel %vm2653, %v72, %v760
  %v2700 = vsel %vm2653, %v73, %v762
  %v2701 = vsel %vm2653, %v74, %v764
  %v2702 = vsel %vm2653, %v75, %v766
  %v2703 = vsel %vm2653, %v76, %v768
  %v2704 = vsel %vm2653, %v77, %v770
  %v2705 = vsel %vm2653, %v78, %v772
  %v2706 = vsel %vm2653, %v79, %v774
  %v2707 = vsel %vm2653, %v80, %v776
  %v2708 = vsel %vm2653, %v81, %v778
  %v2709 = vsel %vm2653, %v82, %v780
  %v2710 = vsel %vm2653, %v83, %v782
  %v2711 = vsel %vm2653, %v84, %v784
  %v2712 = vsel %vm2653, %v85, %v786
  %v2713 = vsel %vm2653, %v86, %v788
  %v2714 = vsel %vm2653, %v87, %v790
  %v2715 = vsel %vm2653, %v88, %v792
  %v2716 = vsel %vm2653, %v89, %v794
  %v2717 = vsel %vm2653, %v90, %v796
  %vm2718 = vcmask 64512
  %v2719 = vsel %vm2718, %v2654, %v926
  %v2720 = vsel %vm2718, %v2655, %v928
  %v2721 = vsel %vm2718, %v2656, %v930
  %v2722 = vsel %vm2718, %v2657, %v932
  %v2723 = vsel %vm2718, %v2658, %v934
  %v2724 = vsel %vm2718, %v2659, %v936
  %v2725 = vsel %vm2718, %v2660, %v938
  %v2726 = vsel %vm2718, %v2661, %v940
  %v2727 = vsel %vm2718, %v2662, %v942
  %v2728 = vsel %vm2718, %v2663, %v944
  %v2729 = vsel %vm2718, %v2664, %v946
  %v2730 = vsel %vm2718, %v2665, %v948
  %v2731 = vsel %vm2718, %v2666, %v950
  %v2732 = vsel %vm2718, %v2667, %v952
  %v2733 = vsel %vm2718, %v2668, %v954
  %v2734 = vsel %vm2718, %v2669, %v956
  %v2735 = vsel %vm2718, %v2670, %v958
  %v2736 = vsel %vm2718, %v2671, %v960
  %v2737 = vsel %vm2718, %v2672, %v962
  %v2738 = vsel %vm2718, %v2673, %v964
  %v2739 = vsel %vm2718, %v2674, %v966
  %v2740 = vsel %vm2718, %v2675, %v968
  %v2741 = vsel %vm2718, %v2676, %v970
  %v2742 = vsel %vm2718, %v2677, %v972
  %v2743 = vsel %vm2718, %v2678, %v974
  %v2744 = vsel %vm2718, %v2679, %v976
  %v2745 = vsel %vm2718, %v2680, %v978
  %v2746 = vsel %vm2718, %v2681, %v980
  %v2747 = vsel %vm2718, %v2682, %v982
  %v2748 = vsel %vm2718, %v2683, %v984
  %v2749 = vsel %vm2718, %v2684, %v986
  %v2750 = vsel %vm2718, %v2685, %v988
  %v2751 = vsel %vm2718, %v2686, %v990
  %v2752 = vsel %vm2718, %v2687, %v992
  %v2753 = vsel %vm2718, %v2688, %v994
  %v2754 = vsel %vm2718, %v2689, %v996
  %v2755 = vsel %vm2718, %v2690, %v998
  %v2756 = vsel %vm2718, %v2691, %v1000
  %v2757 = vsel %vm2718, %v2692, %v1002
  %v2758 = vsel %vm2718, %v2693, %v1004
  %v2759 = vsel %vm2718, %v2694, %v1006
  %v2760 = vsel %vm2718, %v2695, %v1008
  %v2761 = vsel %vm2718, %v2696, %v1010
  %v2762 = vsel %vm2718, %v2697, %v1012
  %v2763 = vsel %vm2718, %v2698, %v1014
  %v2764 = vsel %vm2718, %v2699, %v1016
  %v2765 = vsel %vm2718, %v2700, %v1018
  %v2766 = vsel %vm2718, %v2701, %v1020
  %v2767 = vsel %vm2718, %v2702, %v1022
  %v2768 = vsel %vm2718, %v2703, %v1024
  %v2769 = vsel %vm2718, %v2704, %v1026
  %v2770 = vsel %vm2718, %v2705, %v1028
  %v2771 = vsel %vm2718, %v2706, %v1030
  %v2772 = vsel %vm2718, %v2707, %v1032
  %v2773 = vsel %vm2718, %v2708, %v1034
  %v2774 = vsel %vm2718, %v2709, %v1036
  %v2775 = vsel %vm2718, %v2710, %v1038
  %v2776 = vsel %vm2718, %v2711, %v1040
  %v2777 = vsel %vm2718, %v2712, %v1042
  %v2778 = vsel %vm2718, %v2713, %v1044
  %v2779 = vsel %vm2718, %v2714, %v1046
  %v2780 = vsel %vm2718, %v2715, %v1048
  %v2781 = vsel %vm2718, %v2716, %v1050
  %v2782 = vsel %vm2718, %v2717, %v1052
  %vm2783 = vcmask 97280
  %v2784 = vsel %vm2783, %v2719, %v1182
  %v2785 = vsel %vm2783, %v2720, %v1184
  %v2786 = vsel %vm2783, %v2721, %v1186
  %v2787 = vsel %vm2783, %v2722, %v1188
  %v2788 = vsel %vm2783, %v2723, %v1190
  %v2789 = vsel %vm2783, %v2724, %v1192
  %v2790 = vsel %vm2783, %v2725, %v1194
  %v2791 = vsel %vm2783, %v2726, %v1196
  %v2792 = vsel %vm2783, %v2727, %v1198
  %v2793 = vsel %vm2783, %v2728, %v1200
  %v2794 = vsel %vm2783, %v2729, %v1202
  %v2795 = vsel %vm2783, %v2730, %v1204
  %v2796 = vsel %vm2783, %v2731, %v1206
  %v2797 = vsel %vm2783, %v2732, %v1208
  %v2798 = vsel %vm2783, %v2733, %v1210
  %v2799 = vsel %vm2783, %v2734, %v1212
  %v2800 = vsel %vm2783, %v2735, %v1214
  %v2801 = vsel %vm2783, %v2736, %v1216
  %v2802 = vsel %vm2783, %v2737, %v1218
  %v2803 = vsel %vm2783, %v2738, %v1220
  %v2804 = vsel %vm2783, %v2739, %v1222
  %v2805 = vsel %vm2783, %v2740, %v1224
  %v2806 = vsel %vm2783, %v2741, %v1226
  %v2807 = vsel %vm2783, %v2742, %v1228
  %v2808 = vsel %vm2783, %v2743, %v1230
  %v2809 = vsel %vm2783, %v2744, %v1232
  %v2810 = vsel %vm2783, %v2745, %v1234
  %v2811 = vsel %vm2783, %v2746, %v1236
  %v2812 = vsel %vm2783, %v2747, %v1238
  %v2813 = vsel %vm2783, %v2748, %v1240
  %v2814 = vsel %vm2783, %v2749, %v1242
  %v2815 = vsel %vm2783, %v2750, %v1244
  %v2816 = vsel %vm2783, %v2751, %v1246
  %v2817 = vsel %vm2783, %v2752, %v1248
  %v2818 = vsel %vm2783, %v2753, %v1250
  %v2819 = vsel %vm2783, %v2754, %v1252
  %v2820 = vsel %vm2783, %v2755, %v1254
  %v2821 = vsel %vm2783, %v2756, %v1256
  %v2822 = vsel %vm2783, %v2757, %v1258
  %v2823 = vsel %vm2783, %v2758, %v1260
  %v2824 = vsel %vm2783, %v2759, %v1262
  %v2825 = vsel %vm2783, %v2760, %v1264
  %v2826 = vsel %vm2783, %v2761, %v1266
  %v2827 = vsel %vm2783, %v2762, %v1268
  %v2828 = vsel %vm2783, %v2763, %v1270
  %v2829 = vsel %vm2783, %v2764, %v1272
  %v2830 = vsel %vm2783, %v2765, %v1274
  %v2831 = vsel %vm2783, %v2766, %v1276
  %v2832 = vsel %vm2783, %v2767, %v1278
  %v2833 = vsel %vm2783, %v2768, %v1280
  %v2834 = vsel %vm2783, %v2769, %v1282
  %v2835 = vsel %vm2783, %v2770, %v1284
  %v2836 = vsel %vm2783, %v2771, %v1286
  %v2837 = vsel %vm2783, %v2772, %v1288
  %v2838 = vsel %vm2783, %v2773, %v1290
  %v2839 = vsel %vm2783, %v2774, %v1292
  %v2840 = vsel %vm2783, %v2775, %v1294
  %v2841 = vsel %vm2783, %v2776, %v1296
  %v2842 = vsel %vm2783, %v2777, %v1298
  %v2843 = vsel %vm2783, %v2778, %v1300
  %v2844 = vsel %vm2783, %v2779, %v1302
  %v2845 = vsel %vm2783, %v2780, %v1304
  %v2846 = vsel %vm2783, %v2781, %v1306
  %v2847 = vsel %vm2783, %v2782, %v1308
  %vm2848 = vcmask 130048
  %v2849 = vsel %vm2848, %v2784, %v1438
  %v2850 = vsel %vm2848, %v2785, %v1440
  %v2851 = vsel %vm2848, %v2786, %v1442
  %v2852 = vsel %vm2848, %v2787, %v1444
  %v2853 = vsel %vm2848, %v2788, %v1446
  %v2854 = vsel %vm2848, %v2789, %v1448
  %v2855 = vsel %vm2848, %v2790, %v1450
  %v2856 = vsel %vm2848, %v2791, %v1452
  %v2857 = vsel %vm2848, %v2792, %v1454
  %v2858 = vsel %vm2848, %v2793, %v1456
  %v2859 = vsel %vm2848, %v2794, %v1458
  %v2860 = vsel %vm2848, %v2795, %v1460
  %v2861 = vsel %vm2848, %v2796, %v1462
  %v2862 = vsel %vm2848, %v2797, %v1464
  %v2863 = vsel %vm2848, %v2798, %v1466
  %v2864 = vsel %vm2848, %v2799, %v1468
  %v2865 = vsel %vm2848, %v2800, %v1470
  %v2866 = vsel %vm2848, %v2801, %v1472
  %v2867 = vsel %vm2848, %v2802, %v1474
  %v2868 = vsel %vm2848, %v2803, %v1476
  %v2869 = vsel %vm2848, %v2804, %v1478
  %v2870 = vsel %vm2848, %v2805, %v1480
  %v2871 = vsel %vm2848, %v2806, %v1482
  %v2872 = vsel %vm2848, %v2807, %v1484
  %v2873 = vsel %vm2848, %v2808, %v1486
  %v2874 = vsel %vm2848, %v2809, %v1488
  %v2875 = vsel %vm2848, %v2810, %v1490
  %v2876 = vsel %vm2848, %v2811, %v1492
  %v2877 = vsel %vm2848, %v2812, %v1494
  %v2878 = vsel %vm2848, %v2813, %v1496
  %v2879 = vsel %vm2848, %v2814, %v1498
  %v2880 = vsel %vm2848, %v2815, %v1500
  %v2881 = vsel %vm2848, %v2816, %v1502
  %v2882 = vsel %vm2848, %v2817, %v1504
  %v2883 = vsel %vm2848, %v2818, %v1506
  %v2884 = vsel %vm2848, %v2819, %v1508
  %v2885 = vsel %vm2848, %v2820, %v1510
  %v2886 = vsel %vm2848, %v2821, %v1512
  %v2887 = vsel %vm2848, %v2822, %v1514
  %v2888 = vsel %vm2848, %v2823, %v1516
  %v2889 = vsel %vm2848, %v2824, %v1518
  %v2890 = vsel %vm2848, %v2825, %v1520
  %v2891 = vsel %vm2848, %v2826, %v1522
  %v2892 = vsel %vm2848, %v2827, %v1524
  %v2893 = vsel %vm2848, %v2828, %v1526
  %v2894 = vsel %vm2848, %v2829, %v1528
  %v2895 = vsel %vm2848, %v2830, %v1530
  %v2896 = vsel %vm2848, %v2831, %v1532
  %v2897 = vsel %vm2848, %v2832, %v1534
  %v2898 = vsel %vm2848, %v2833, %v1536
  %v2899 = vsel %vm2848, %v2834, %v1538
  %v2900 = vsel %vm2848, %v2835, %v1540
  %v2901 = vsel %vm2848, %v2836, %v1542
  %v2902 = vsel %vm2848, %v2837, %v1544
  %v2903 = vsel %vm2848, %v2838, %v1546
  %v2904 = vsel %vm2848, %v2839, %v1548
  %v2905 = vsel %vm2848, %v2840, %v1550
  %v2906 = vsel %vm2848, %v2841, %v1552
  %v2907 = vsel %vm2848, %v2842, %v1554
  %v2908 = vsel %vm2848, %v2843, %v1556
  %v2909 = vsel %vm2848, %v2844, %v1558
  %v2910 = vsel %vm2848, %v2845, %v1560
  %v2911 = vsel %vm2848, %v2846, %v1562
  %v2912 = vsel %vm2848, %v2847, %v1564
  %vm2913 = vcmask 162816
  %v2914 = vsel %vm2913, %v2849, %v1694
  %v2915 = vsel %vm2913, %v2850, %v1696
  %v2916 = vsel %vm2913, %v2851, %v1698
  %v2917 = vsel %vm2913, %v2852, %v1700
  %v2918 = vsel %vm2913, %v2853, %v1702
  %v2919 = vsel %vm2913, %v2854, %v1704
  %v2920 = vsel %vm2913, %v2855, %v1706
  %v2921 = vsel %vm2913, %v2856, %v1708
  %v2922 = vsel %vm2913, %v2857, %v1710
  %v2923 = vsel %vm2913, %v2858, %v1712
  %v2924 = vsel %vm2913, %v2859, %v1714
  %v2925 = vsel %vm2913, %v2860, %v1716
  %v2926 = vsel %vm2913, %v2861, %v1718
  %v2927 = vsel %vm2913, %v2862, %v1720
  %v2928 = vsel %vm2913, %v2863, %v1722
  %v2929 = vsel %vm2913, %v2864, %v1724
  %v2930 = vsel %vm2913, %v2865, %v1726
  %v2931 = vsel %vm2913, %v2866, %v1728
  %v2932 = vsel %vm2913, %v2867, %v1730
  %v2933 = vsel %vm2913, %v2868, %v1732
  %v2934 = vsel %vm2913, %v2869, %v1734
  %v2935 = vsel %vm2913, %v2870, %v1736
  %v2936 = vsel %vm2913, %v2871, %v1738
  %v2937 = vsel %vm2913, %v2872, %v1740
  %v2938 = vsel %vm2913, %v2873, %v1742
  %v2939 = vsel %vm2913, %v2874, %v1744
  %v2940 = vsel %vm2913, %v2875, %v1746
  %v2941 = vsel %vm2913, %v2876, %v1748
  %v2942 = vsel %vm2913, %v2877, %v1750
  %v2943 = vsel %vm2913, %v2878, %v1752
  %v2944 = vsel %vm2913, %v2879, %v1754
  %v2945 = vsel %vm2913, %v2880, %v1756
  %v2946 = vsel %vm2913, %v2881, %v1758
  %v2947 = vsel %vm2913, %v2882, %v1760
  %v2948 = vsel %vm2913, %v2883, %v1762
  %v2949 = vsel %vm2913, %v2884, %v1764
  %v2950 = vsel %vm2913, %v2885, %v1766
  %v2951 = vsel %vm2913, %v2886, %v1768
  %v2952 = vsel %vm2913, %v2887, %v1770
  %v2953 = vsel %vm2913, %v2888, %v1772
  %v2954 = vsel %vm2913, %v2889, %v1774
  %v2955 = vsel %vm2913, %v2890, %v1776
  %v2956 = vsel %vm2913, %v2891, %v1778
  %v2957 = vsel %vm2913, %v2892, %v1780
  %v2958 = vsel %vm2913, %v2893, %v1782
  %v2959 = vsel %vm2913, %v2894, %v1784
  %v2960 = vsel %vm2913, %v2895, %v1786
  %v2961 = vsel %vm2913, %v2896, %v1788
  %v2962 = vsel %vm2913, %v2897, %v1790
  %v2963 = vsel %vm2913, %v2898, %v1792
  %v2964 = vsel %vm2913, %v2899, %v1794
  %v2965 = vsel %vm2913, %v2900, %v1796
  %v2966 = vsel %vm2913, %v2901, %v1798
  %v2967 = vsel %vm2913, %v2902, %v1800
  %v2968 = vsel %vm2913, %v2903, %v1802
  %v2969 = vsel %vm2913, %v2904, %v1804
  %v2970 = vsel %vm2913, %v2905, %v1806
  %v2971 = vsel %vm2913, %v2906, %v1808
  %v2972 = vsel %vm2913, %v2907, %v1810
  %v2973 = vsel %vm2913, %v2908, %v1812
  %v2974 = vsel %vm2913, %v2909, %v1814
  %v2975 = vsel %vm2913, %v2910, %v1816
  %v2976 = vsel %vm2913, %v2911, %v1818
  %v2977 = vsel %vm2913, %v2912, %v1820
  %vm2978 = vcmask 195584
  %v2979 = vsel %vm2978, %v2914, %v1950
  %v2980 = vsel %vm2978, %v2915, %v1952
  %v2981 = vsel %vm2978, %v2916, %v1954
  %v2982 = vsel %vm2978, %v2917, %v1956
  %v2983 = vsel %vm2978, %v2918, %v1958
  %v2984 = vsel %vm2978, %v2919, %v1960
  %v2985 = vsel %vm2978, %v2920, %v1962
  %v2986 = vsel %vm2978, %v2921, %v1964
  %v2987 = vsel %vm2978, %v2922, %v1966
  %v2988 = vsel %vm2978, %v2923, %v1968
  %v2989 = vsel %vm2978, %v2924, %v1970
  %v2990 = vsel %vm2978, %v2925, %v1972
  %v2991 = vsel %vm2978, %v2926, %v1974
  %v2992 = vsel %vm2978, %v2927, %v1976
  %v2993 = vsel %vm2978, %v2928, %v1978
  %v2994 = vsel %vm2978, %v2929, %v1980
  %v2995 = vsel %vm2978, %v2930, %v1982
  %v2996 = vsel %vm2978, %v2931, %v1984
  %v2997 = vsel %vm2978, %v2932, %v1986
  %v2998 = vsel %vm2978, %v2933, %v1988
  %v2999 = vsel %vm2978, %v2934, %v1990
  %v3000 = vsel %vm2978, %v2935, %v1992
  %v3001 = vsel %vm2978, %v2936, %v1994
  %v3002 = vsel %vm2978, %v2937, %v1996
  %v3003 = vsel %vm2978, %v2938, %v1998
  %v3004 = vsel %vm2978, %v2939, %v2000
  %v3005 = vsel %vm2978, %v2940, %v2002
  %v3006 = vsel %vm2978, %v2941, %v2004
  %v3007 = vsel %vm2978, %v2942, %v2006
  %v3008 = vsel %vm2978, %v2943, %v2008
  %v3009 = vsel %vm2978, %v2944, %v2010
  %v3010 = vsel %vm2978, %v2945, %v2012
  %v3011 = vsel %vm2978, %v2946, %v2014
  %v3012 = vsel %vm2978, %v2947, %v2016
  %v3013 = vsel %vm2978, %v2948, %v2018
  %v3014 = vsel %vm2978, %v2949, %v2020
  %v3015 = vsel %vm2978, %v2950, %v2022
  %v3016 = vsel %vm2978, %v2951, %v2024
  %v3017 = vsel %vm2978, %v2952, %v2026
  %v3018 = vsel %vm2978, %v2953, %v2028
  %v3019 = vsel %vm2978, %v2954, %v2030
  %v3020 = vsel %vm2978, %v2955, %v2032
  %v3021 = vsel %vm2978, %v2956, %v2034
  %v3022 = vsel %vm2978, %v2957, %v2036
  %v3023 = vsel %vm2978, %v2958, %v2038
  %v3024 = vsel %vm2978, %v2959, %v2040
  %v3025 = vsel %vm2978, %v2960, %v2042
  %v3026 = vsel %vm2978, %v2961, %v2044
  %v3027 = vsel %vm2978, %v2962, %v2046
  %v3028 = vsel %vm2978, %v2963, %v2048
  %v3029 = vsel %vm2978, %v2964, %v2050
  %v3030 = vsel %vm2978, %v2965, %v2052
  %v3031 = vsel %vm2978, %v2966, %v2054
  %v3032 = vsel %vm2978, %v2967, %v2056
  %v3033 = vsel %vm2978, %v2968, %v2058
  %v3034 = vsel %vm2978, %v2969, %v2060
  %v3035 = vsel %vm2978, %v2970, %v2062
  %v3036 = vsel %vm2978, %v2971, %v2064
  %v3037 = vsel %vm2978, %v2972, %v2066
  %v3038 = vsel %vm2978, %v2973, %v2068
  %v3039 = vsel %vm2978, %v2974, %v2070
  %v3040 = vsel %vm2978, %v2975, %v2072
  %v3041 = vsel %vm2978, %v2976, %v2074
  %v3042 = vsel %vm2978, %v2977, %v2076
  %vm3043 = vcmask 228352
  %v3044 = vsel %vm3043, %v2979, %v2206
  %v3045 = vsel %vm3043, %v2980, %v2208
  %v3046 = vsel %vm3043, %v2981, %v2210
  %v3047 = vsel %vm3043, %v2982, %v2212
  %v3048 = vsel %vm3043, %v2983, %v2214
  %v3049 = vsel %vm3043, %v2984, %v2216
  %v3050 = vsel %vm3043, %v2985, %v2218
  %v3051 = vsel %vm3043, %v2986, %v2220
  %v3052 = vsel %vm3043, %v2987, %v2222
  %v3053 = vsel %vm3043, %v2988, %v2224
  %v3054 = vsel %vm3043, %v2989, %v2226
  %v3055 = vsel %vm3043, %v2990, %v2228
  %v3056 = vsel %vm3043, %v2991, %v2230
  %v3057 = vsel %vm3043, %v2992, %v2232
  %v3058 = vsel %vm3043, %v2993, %v2234
  %v3059 = vsel %vm3043, %v2994, %v2236
  %v3060 = vsel %vm3043, %v2995, %v2238
  %v3061 = vsel %vm3043, %v2996, %v2240
  %v3062 = vsel %vm3043, %v2997, %v2242
  %v3063 = vsel %vm3043, %v2998, %v2244
  %v3064 = vsel %vm3043, %v2999, %v2246
  %v3065 = vsel %vm3043, %v3000, %v2248
  %v3066 = vsel %vm3043, %v3001, %v2250
  %v3067 = vsel %vm3043, %v3002, %v2252
  %v3068 = vsel %vm3043, %v3003, %v2254
  %v3069 = vsel %vm3043, %v3004, %v2256
  %v3070 = vsel %vm3043, %v3005, %v2258
  %v3071 = vsel %vm3043, %v3006, %v2260
  %v3072 = vsel %vm3043, %v3007, %v2262
  %v3073 = vsel %vm3043, %v3008, %v2264
  %v3074 = vsel %vm3043, %v3009, %v2266
  %v3075 = vsel %vm3043, %v3010, %v2268
  %v3076 = vsel %vm3043, %v3011, %v2270
  %v3077 = vsel %vm3043, %v3012, %v2272
  %v3078 = vsel %vm3043, %v3013, %v2274
  %v3079 = vsel %vm3043, %v3014, %v2276
  %v3080 = vsel %vm3043, %v3015, %v2278
  %v3081 = vsel %vm3043, %v3016, %v2280
  %v3082 = vsel %vm3043, %v3017, %v2282
  %v3083 = vsel %vm3043, %v3018, %v2284
  %v3084 = vsel %vm3043, %v3019, %v2286
  %v3085 = vsel %vm3043, %v3020, %v2288
  %v3086 = vsel %vm3043, %v3021, %v2290
  %v3087 = vsel %vm3043, %v3022, %v2292
  %v3088 = vsel %vm3043, %v3023, %v2294
  %v3089 = vsel %vm3043, %v3024, %v2296
  %v3090 = vsel %vm3043, %v3025, %v2298
  %v3091 = vsel %vm3043, %v3026, %v2300
  %v3092 = vsel %vm3043, %v3027, %v2302
  %v3093 = vsel %vm3043, %v3028, %v2304
  %v3094 = vsel %vm3043, %v3029, %v2306
  %v3095 = vsel %vm3043, %v3030, %v2308
  %v3096 = vsel %vm3043, %v3031, %v2310
  %v3097 = vsel %vm3043, %v3032, %v2312
  %v3098 = vsel %vm3043, %v3033, %v2314
  %v3099 = vsel %vm3043, %v3034, %v2316
  %v3100 = vsel %vm3043, %v3035, %v2318
  %v3101 = vsel %vm3043, %v3036, %v2320
  %v3102 = vsel %vm3043, %v3037, %v2322
  %v3103 = vsel %vm3043, %v3038, %v2324
  %v3104 = vsel %vm3043, %v3039, %v2326
  %v3105 = vsel %vm3043, %v3040, %v2328
  %v3106 = vsel %vm3043, %v3041, %v2330
  %v3107 = vsel %vm3043, %v3042, %v2332
  %vm3108 = vcmask 261120
  %v3109 = vsel %vm3108, %v3044, %v2462
  %v3110 = vsel %vm3108, %v3045, %v2464
  %v3111 = vsel %vm3108, %v3046, %v2466
  %v3112 = vsel %vm3108, %v3047, %v2468
  %v3113 = vsel %vm3108, %v3048, %v2470
  %v3114 = vsel %vm3108, %v3049, %v2472
  %v3115 = vsel %vm3108, %v3050, %v2474
  %v3116 = vsel %vm3108, %v3051, %v2476
  %v3117 = vsel %vm3108, %v3052, %v2478
  %v3118 = vsel %vm3108, %v3053, %v2480
  %v3119 = vsel %vm3108, %v3054, %v2482
  %v3120 = vsel %vm3108, %v3055, %v2484
  %v3121 = vsel %vm3108, %v3056, %v2486
  %v3122 = vsel %vm3108, %v3057, %v2488
  %v3123 = vsel %vm3108, %v3058, %v2490
  %v3124 = vsel %vm3108, %v3059, %v2492
  %v3125 = vsel %vm3108, %v3060, %v2494
  %v3126 = vsel %vm3108, %v3061, %v2496
  %v3127 = vsel %vm3108, %v3062, %v2498
  %v3128 = vsel %vm3108, %v3063, %v2500
  %v3129 = vsel %vm3108, %v3064, %v2502
  %v3130 = vsel %vm3108, %v3065, %v2504
  %v3131 = vsel %vm3108, %v3066, %v2506
  %v3132 = vsel %vm3108, %v3067, %v2508
  %v3133 = vsel %vm3108, %v3068, %v2510
  %v3134 = vsel %vm3108, %v3069, %v2512
  %v3135 = vsel %vm3108, %v3070, %v2514
  %v3136 = vsel %vm3108, %v3071, %v2516
  %v3137 = vsel %vm3108, %v3072, %v2518
  %v3138 = vsel %vm3108, %v3073, %v2520
  %v3139 = vsel %vm3108, %v3074, %v2522
  %v3140 = vsel %vm3108, %v3075, %v2524
  %v3141 = vsel %vm3108, %v3076, %v2526
  %v3142 = vsel %vm3108, %v3077, %v2528
  %v3143 = vsel %vm3108, %v3078, %v2530
  %v3144 = vsel %vm3108, %v3079, %v2532
  %v3145 = vsel %vm3108, %v3080, %v2534
  %v3146 = vsel %vm3108, %v3081, %v2536
  %v3147 = vsel %vm3108, %v3082, %v2538
  %v3148 = vsel %vm3108, %v3083, %v2540
  %v3149 = vsel %vm3108, %v3084, %v2542
  %v3150 = vsel %vm3108, %v3085, %v2544
  %v3151 = vsel %vm3108, %v3086, %v2546
  %v3152 = vsel %vm3108, %v3087, %v2548
  %v3153 = vsel %vm3108, %v3088, %v2550
  %v3154 = vsel %vm3108, %v3089, %v2552
  %v3155 = vsel %vm3108, %v3090, %v2554
  %v3156 = vsel %vm3108, %v3091, %v2556
  %v3157 = vsel %vm3108, %v3092, %v2558
  %v3158 = vsel %vm3108, %v3093, %v2560
  %v3159 = vsel %vm3108, %v3094, %v2562
  %v3160 = vsel %vm3108, %v3095, %v2564
  %v3161 = vsel %vm3108, %v3096, %v2566
  %v3162 = vsel %vm3108, %v3097, %v2568
  %v3163 = vsel %vm3108, %v3098, %v2570
  %v3164 = vsel %vm3108, %v3099, %v2572
  %v3165 = vsel %vm3108, %v3100, %v2574
  %v3166 = vsel %vm3108, %v3101, %v2576
  %v3167 = vsel %vm3108, %v3102, %v2578
  %v3168 = vsel %vm3108, %v3103, %v2580
  %v3169 = vsel %vm3108, %v3104, %v2582
  %v3170 = vsel %vm3108, %v3105, %v2584
  %v3171 = vsel %vm3108, %v3106, %v2586
  %v3172 = vsel %vm3108, %v3107, %v2588
  %v3173 = vpack.c.bf16 %v3110, %v3109
  %v3174 = vpack.c.bf16 %v3112, %v3111
  %v3175 = vpack.c.bf16 %v3114, %v3113
  %v3176 = vpack.c.bf16 %v3116, %v3115
  %v3177 = vpack.c.bf16 %v3118, %v3117
  %v3178 = vpack.c.bf16 %v3120, %v3119
  %v3179 = vpack.c.bf16 %v3122, %v3121
  %v3180 = vpack.c.bf16 %v3124, %v3123
  %v3181 = vpack.c.bf16 %v3126, %v3125
  %v3182 = vpack.c.bf16 %v3128, %v3127
  %v3183 = vpack.c.bf16 %v3130, %v3129
  %v3184 = vpack.c.bf16 %v3132, %v3131
  %v3185 = vpack.c.bf16 %v3134, %v3133
  %v3186 = vpack.c.bf16 %v3136, %v3135
  %v3187 = vpack.c.bf16 %v3138, %v3137
  %v3188 = vpack.c.bf16 %v3140, %v3139
  %v3189 = vpack.c.bf16 %v3142, %v3141
  %v3190 = vpack.c.bf16 %v3144, %v3143
  %v3191 = vpack.c.bf16 %v3146, %v3145
  %v3192 = vpack.c.bf16 %v3148, %v3147
  %v3193 = vpack.c.bf16 %v3150, %v3149
  %v3194 = vpack.c.bf16 %v3152, %v3151
  %v3195 = vpack.c.bf16 %v3154, %v3153
  %v3196 = vpack.c.bf16 %v3156, %v3155
  %v3197 = vpack.c.bf16 %v3158, %v3157
  %v3198 = vpack.c.bf16 %v3160, %v3159
  %v3199 = vpack.c.bf16 %v3162, %v3161
  %v3200 = vpack.c.bf16 %v3164, %v3163
  %v3201 = vpack.c.bf16 %v3166, %v3165
  %v3202 = vpack.c.bf16 %v3168, %v3167
  %v3203 = vpack.c.bf16 %v3170, %v3169
  %v3204 = vpack.c.bf16 %v3172, %v3171
  %v3205 = vld [vmem:[%s1] sm:$0xf]
  %v3206 = vld [vmem:[%s1 + $0x4] sm:$0xf]
  %v3207 = vld [vmem:[%s1 + $0x8] sm:$0xf]
  %v3208 = vld [vmem:[%s1 + $0xc] sm:$0xf]
  %v3209 = vld [vmem:[%s1 + $0x10] sm:$0x3]
  %v3210 = vld [vmem:[%s2] sm:$0x1]
  %v3212 = vperm.slane %v3210, 0
  %v3219 = vunpack.c.l.b16 %v3205
  %v3220 = vunpack.c.l.b16 %v3206
  %v3221 = vunpack.c.l.b16 %v3207
  %v3222 = vunpack.c.l.b16 %v3208
  %v3223 = vunpack.c.l.b16 %v3209
  %v3224 = vpack.c.b16 %v3220, %v3219
  %v3225 = vpack.c.b16 %v3222, %v3221
  %v3226 = vpack.c.b16 %v3223, %v3223
  %vm3229 = vcmask 293888
  %v3231 = vsel %vm3229, %v3173, 0
  %v3234 = vsel %vm3229, %v3174, 0
  %v3237 = vsel %vm3229, %v3175, 0
  %v3240 = vsel %vm3229, %v3176, 0
  %v3243 = vsel %vm3229, %v3177, 0
  %v3246 = vsel %vm3229, %v3178, 0
  %v3249 = vsel %vm3229, %v3179, 0
  %v3252 = vsel %vm3229, %v3180, 0
  %v3255 = vsel %vm3229, %v3181, 0
  %v3258 = vsel %vm3229, %v3182, 0
  %v3261 = vsel %vm3229, %v3183, 0
  %v3264 = vsel %vm3229, %v3184, 0
  %v3267 = vsel %vm3229, %v3185, 0
  %v3270 = vsel %vm3229, %v3186, 0
  %v3273 = vsel %vm3229, %v3187, 0
  %v3276 = vsel %vm3229, %v3188, 0
  %v3279 = vsel %vm3229, %v3189, 0
  %v3282 = vsel %vm3229, %v3190, 0
  %v3285 = vsel %vm3229, %v3191, 0
  %v3288 = vsel %vm3229, %v3192, 0
  %v3291 = vsel %vm3229, %v3193, 0
  %v3294 = vsel %vm3229, %v3194, 0
  %v3297 = vsel %vm3229, %v3195, 0
  %v3300 = vsel %vm3229, %v3196, 0
  %v3303 = vsel %vm3229, %v3197, 0
  %v3306 = vsel %vm3229, %v3198, 0
  %v3309 = vsel %vm3229, %v3199, 0
  %v3312 = vsel %vm3229, %v3200, 0
  %v3315 = vsel %vm3229, %v3201, 0
  %v3318 = vsel %vm3229, %v3202, 0
  %v3321 = vsel %vm3229, %v3203, 0
  %v3324 = vsel %vm3229, %v3204, 0
  %vm3326 = vcmask 1041408
  %v3328 = vsel %vm3326, %v3226, 0
  %3330 = vmatpush.bf16.msra.mxu0 0
  %3331 = vmatpush.bf16.msra.mxu0 0
  %3332 = vmatpush.bf16.msra.mxu0 0
  %3333 = vmatpush.bf16.msra.mxu0 0
  %3334 = vmatpush.bf16.msra.mxu0 0
  %3335 = vmatpush.bf16.msra.mxu0 %v3328
  %3336 = vmatpush.bf16.msra.mxu0 %v3225
  %3337 = vmatpush.bf16.msra.mxu0 %v3224
  %3338 = vmatmul.bf16.gmra.mxu0 %v3231
  %v3339 = vpop.f32.mrf.mxu0
  %v3340 = vadd.f32 %v3212, %v3339
  %v3341 = vpop.f32.mrf.mxu0
  %v3342 = vadd.f32 %v3212, %v3341
  %3343 = vmatmul.bf16.gmra.mxu0 %v3234
  %v3344 = vpop.f32.mrf.mxu0
  %v3345 = vadd.f32 %v3212, %v3344
  %v3346 = vpop.f32.mrf.mxu0
  %v3347 = vadd.f32 %v3212, %v3346
  %3348 = vmatmul.bf16.gmra.mxu0 %v3237
  %v3349 = vpop.f32.mrf.mxu0
  %v3350 = vadd.f32 %v3212, %v3349
  %v3351 = vpop.f32.mrf.mxu0
  %v3352 = vadd.f32 %v3212, %v3351
  %3353 = vmatmul.bf16.gmra.mxu0 %v3240
  %v3354 = vpop.f32.mrf.mxu0
  %v3355 = vadd.f32 %v3212, %v3354
  %v3356 = vpop.f32.mrf.mxu0
  %v3357 = vadd.f32 %v3212, %v3356
  %3358 = vmatmul.bf16.gmra.mxu0 %v3243
  %v3359 = vpop.f32.mrf.mxu0
  %v3360 = vadd.f32 %v3212, %v3359
  %v3361 = vpop.f32.mrf.mxu0
  %v3362 = vadd.f32 %v3212, %v3361
  %3363 = vmatmul.bf16.gmra.mxu0 %v3246
  %v3364 = vpop.f32.mrf.mxu0
  %v3365 = vadd.f32 %v3212, %v3364
  %v3366 = vpop.f32.mrf.mxu0
  %v3367 = vadd.f32 %v3212, %v3366
  %3368 = vmatmul.bf16.gmra.mxu0 %v3249
  %v3369 = vpop.f32.mrf.mxu0
  %v3370 = vadd.f32 %v3212, %v3369
  %v3371 = vpop.f32.mrf.mxu0
  %v3372 = vadd.f32 %v3212, %v3371
  %3373 = vmatmul.bf16.gmra.mxu0 %v3252
  %v3374 = vpop.f32.mrf.mxu0
  %v3375 = vadd.f32 %v3212, %v3374
  %v3376 = vpop.f32.mrf.mxu0
  %v3377 = vadd.f32 %v3212, %v3376
  %3378 = vmatmul.bf16.gmra.mxu0 %v3255
  %v3379 = vpop.f32.mrf.mxu0
  %v3380 = vadd.f32 %v3212, %v3379
  %v3381 = vpop.f32.mrf.mxu0
  %v3382 = vadd.f32 %v3212, %v3381
  %3383 = vmatmul.bf16.gmra.mxu0 %v3258
  %v3384 = vpop.f32.mrf.mxu0
  %v3385 = vadd.f32 %v3212, %v3384
  %v3386 = vpop.f32.mrf.mxu0
  %v3387 = vadd.f32 %v3212, %v3386
  %3388 = vmatmul.bf16.gmra.mxu0 %v3261
  %v3389 = vpop.f32.mrf.mxu0
  %v3390 = vadd.f32 %v3212, %v3389
  %v3391 = vpop.f32.mrf.mxu0
  %v3392 = vadd.f32 %v3212, %v3391
  %3393 = vmatmul.bf16.gmra.mxu0 %v3264
  %v3394 = vpop.f32.mrf.mxu0
  %v3395 = vadd.f32 %v3212, %v3394
  %v3396 = vpop.f32.mrf.mxu0
  %v3397 = vadd.f32 %v3212, %v3396
  %3398 = vmatmul.bf16.gmra.mxu0 %v3267
  %v3399 = vpop.f32.mrf.mxu0
  %v3400 = vadd.f32 %v3212, %v3399
  %v3401 = vpop.f32.mrf.mxu0
  %v3402 = vadd.f32 %v3212, %v3401
  %3403 = vmatmul.bf16.gmra.mxu0 %v3270
  %v3404 = vpop.f32.mrf.mxu0
  %v3405 = vadd.f32 %v3212, %v3404
  %v3406 = vpop.f32.mrf.mxu0
  %v3407 = vadd.f32 %v3212, %v3406
  %3408 = vmatmul.bf16.gmra.mxu0 %v3273
  %v3409 = vpop.f32.mrf.mxu0
  %v3410 = vadd.f32 %v3212, %v3409
  %v3411 = vpop.f32.mrf.mxu0
  %v3412 = vadd.f32 %v3212, %v3411
  %3413 = vmatmul.bf16.gmra.mxu0 %v3276
  %v3414 = vpop.f32.mrf.mxu0
  %v3415 = vadd.f32 %v3212, %v3414
  %v3416 = vpop.f32.mrf.mxu0
  %v3417 = vadd.f32 %v3212, %v3416
  %3418 = vmatmul.bf16.gmra.mxu0 %v3279
  %v3419 = vpop.f32.mrf.mxu0
  %v3420 = vadd.f32 %v3212, %v3419
  %v3421 = vpop.f32.mrf.mxu0
  %v3422 = vadd.f32 %v3212, %v3421
  %3423 = vmatmul.bf16.gmra.mxu0 %v3282
  %v3424 = vpop.f32.mrf.mxu0
  %v3425 = vadd.f32 %v3212, %v3424
  %v3426 = vpop.f32.mrf.mxu0
  %v3427 = vadd.f32 %v3212, %v3426
  %3428 = vmatmul.bf16.gmra.mxu0 %v3285
  %v3429 = vpop.f32.mrf.mxu0
  %v3430 = vadd.f32 %v3212, %v3429
  %v3431 = vpop.f32.mrf.mxu0
  %v3432 = vadd.f32 %v3212, %v3431
  %3433 = vmatmul.bf16.gmra.mxu0 %v3288
  %v3434 = vpop.f32.mrf.mxu0
  %v3435 = vadd.f32 %v3212, %v3434
  %v3436 = vpop.f32.mrf.mxu0
  %v3437 = vadd.f32 %v3212, %v3436
  %3438 = vmatmul.bf16.gmra.mxu0 %v3291
  %v3439 = vpop.f32.mrf.mxu0
  %v3440 = vadd.f32 %v3212, %v3439
  %v3441 = vpop.f32.mrf.mxu0
  %v3442 = vadd.f32 %v3212, %v3441
  %3443 = vmatmul.bf16.gmra.mxu0 %v3294
  %v3444 = vpop.f32.mrf.mxu0
  %v3445 = vadd.f32 %v3212, %v3444
  %v3446 = vpop.f32.mrf.mxu0
  %v3447 = vadd.f32 %v3212, %v3446
  %3448 = vmatmul.bf16.gmra.mxu0 %v3297
  %v3449 = vpop.f32.mrf.mxu0
  %v3450 = vadd.f32 %v3212, %v3449
  %v3451 = vpop.f32.mrf.mxu0
  %v3452 = vadd.f32 %v3212, %v3451
  %3453 = vmatmul.bf16.gmra.mxu0 %v3300
  %v3454 = vpop.f32.mrf.mxu0
  %v3455 = vadd.f32 %v3212, %v3454
  %v3456 = vpop.f32.mrf.mxu0
  %v3457 = vadd.f32 %v3212, %v3456
  %3458 = vmatmul.bf16.gmra.mxu0 %v3303
  %v3459 = vpop.f32.mrf.mxu0
  %v3460 = vadd.f32 %v3212, %v3459
  %v3461 = vpop.f32.mrf.mxu0
  %v3462 = vadd.f32 %v3212, %v3461
  %3463 = vmatmul.bf16.gmra.mxu0 %v3306
  %v3464 = vpop.f32.mrf.mxu0
  %v3465 = vadd.f32 %v3212, %v3464
  %v3466 = vpop.f32.mrf.mxu0
  %v3467 = vadd.f32 %v3212, %v3466
  %3468 = vmatmul.bf16.gmra.mxu0 %v3309
  %v3469 = vpop.f32.mrf.mxu0
  %v3470 = vadd.f32 %v3212, %v3469
  %v3471 = vpop.f32.mrf.mxu0
  %v3472 = vadd.f32 %v3212, %v3471
  %3473 = vmatmul.bf16.gmra.mxu0 %v3312
  %v3474 = vpop.f32.mrf.mxu0
  %v3475 = vadd.f32 %v3212, %v3474
  %v3476 = vpop.f32.mrf.mxu0
  %v3477 = vadd.f32 %v3212, %v3476
  %3478 = vmatmul.bf16.gmra.mxu0 %v3315
  %v3479 = vpop.f32.mrf.mxu0
  %v3480 = vadd.f32 %v3212, %v3479
  %v3481 = vpop.f32.mrf.mxu0
  %v3482 = vadd.f32 %v3212, %v3481
  %3483 = vmatmul.bf16.gmra.mxu0 %v3318
  %v3484 = vpop.f32.mrf.mxu0
  %v3485 = vadd.f32 %v3212, %v3484
  %v3486 = vpop.f32.mrf.mxu0
  %v3487 = vadd.f32 %v3212, %v3486
  %3488 = vmatmul.bf16.gmra.mxu0 %v3321
  %v3489 = vpop.f32.mrf.mxu0
  %v3490 = vadd.f32 %v3212, %v3489
  %v3491 = vpop.f32.mrf.mxu0
  %v3492 = vadd.f32 %v3212, %v3491
  %3493 = vmatmul.bf16.gmra.mxu0 %v3324
  %v3494 = vpop.f32.mrf.mxu0
  %v3495 = vadd.f32 %v3212, %v3494
  %v3496 = vpop.f32.mrf.mxu0
  %v3497 = vadd.f32 %v3212, %v3496
  %3498 = vdwg.mxu0
  %v3499 = vmax.f32 %v3340, 0.0
  %v3500 = vmax.f32 %v3342, 0.0
  %v3501 = vmax.f32 %v3345, 0.0
  %v3502 = vmax.f32 %v3347, 0.0
  %v3503 = vmax.f32 %v3350, 0.0
  %v3504 = vmax.f32 %v3352, 0.0
  %v3505 = vmax.f32 %v3355, 0.0
  %v3506 = vmax.f32 %v3357, 0.0
  %v3507 = vmax.f32 %v3360, 0.0
  %v3508 = vmax.f32 %v3362, 0.0
  %v3509 = vmax.f32 %v3365, 0.0
  %v3510 = vmax.f32 %v3367, 0.0
  %v3511 = vmax.f32 %v3370, 0.0
  %v3512 = vmax.f32 %v3372, 0.0
  %v3513 = vmax.f32 %v3375, 0.0
  %v3514 = vmax.f32 %v3377, 0.0
  %v3515 = vmax.f32 %v3380, 0.0
  %v3516 = vmax.f32 %v3382, 0.0
  %v3517 = vmax.f32 %v3385, 0.0
  %v3518 = vmax.f32 %v3387, 0.0
  %v3519 = vmax.f32 %v3390, 0.0
  %v3520 = vmax.f32 %v3392, 0.0
  %v3521 = vmax.f32 %v3395, 0.0
  %v3522 = vmax.f32 %v3397, 0.0
  %v3523 = vmax.f32 %v3400, 0.0
  %v3524 = vmax.f32 %v3402, 0.0
  %v3525 = vmax.f32 %v3405, 0.0
  %v3526 = vmax.f32 %v3407, 0.0
  %v3527 = vmax.f32 %v3410, 0.0
  %v3528 = vmax.f32 %v3412, 0.0
  %v3529 = vmax.f32 %v3415, 0.0
  %v3530 = vmax.f32 %v3417, 0.0
  %v3531 = vmax.f32 %v3420, 0.0
  %v3532 = vmax.f32 %v3422, 0.0
  %v3533 = vmax.f32 %v3425, 0.0
  %v3534 = vmax.f32 %v3427, 0.0
  %v3535 = vmax.f32 %v3430, 0.0
  %v3536 = vmax.f32 %v3432, 0.0
  %v3537 = vmax.f32 %v3435, 0.0
  %v3538 = vmax.f32 %v3437, 0.0
  %v3539 = vmax.f32 %v3440, 0.0
  %v3540 = vmax.f32 %v3442, 0.0
  %v3541 = vmax.f32 %v3445, 0.0
  %v3542 = vmax.f32 %v3447, 0.0
  %v3543 = vmax.f32 %v3450, 0.0
  %v3544 = vmax.f32 %v3452, 0.0
  %v3545 = vmax.f32 %v3455, 0.0
  %v3546 = vmax.f32 %v3457, 0.0
  %v3547 = vmax.f32 %v3460, 0.0
  %v3548 = vmax.f32 %v3462, 0.0
  %v3549 = vmax.f32 %v3465, 0.0
  %v3550 = vmax.f32 %v3467, 0.0
  %v3551 = vmax.f32 %v3470, 0.0
  %v3552 = vmax.f32 %v3472, 0.0
  %v3553 = vmax.f32 %v3475, 0.0
  %v3554 = vmax.f32 %v3477, 0.0
  %v3555 = vmax.f32 %v3480, 0.0
  %v3556 = vmax.f32 %v3482, 0.0
  %v3557 = vmax.f32 %v3485, 0.0
  %v3558 = vmax.f32 %v3487, 0.0
  %v3559 = vmax.f32 %v3490, 0.0
  %v3560 = vmax.f32 %v3492, 0.0
  %v3561 = vmax.f32 %v3495, 0.0
  %v3562 = vmax.f32 %v3497, 0.0
  %v3563 = vsel %vm3108, %v3499, 0.0
  %v3564 = vsel %vm3108, %v3500, 0.0
  %v3565 = vadd.f32 %v3563, %v3564
  %v3566 = vsel %vm3108, %v3501, 0.0
  %v3567 = vadd.f32 %v3565, %v3566
  %v3568 = vsel %vm3108, %v3502, 0.0
  %v3569 = vadd.f32 %v3567, %v3568
  %v3570 = vsel %vm3108, %v3503, 0.0
  %v3571 = vadd.f32 %v3569, %v3570
  %v3572 = vsel %vm3108, %v3504, 0.0
  %v3573 = vadd.f32 %v3571, %v3572
  %v3574 = vsel %vm3108, %v3505, 0.0
  %v3575 = vadd.f32 %v3573, %v3574
  %v3576 = vsel %vm3108, %v3506, 0.0
  %v3577 = vadd.f32 %v3575, %v3576
  %v3578 = vsel %vm3108, %v3507, 0.0
  %v3579 = vadd.f32 %v3577, %v3578
  %v3580 = vsel %vm3108, %v3508, 0.0
  %v3581 = vadd.f32 %v3579, %v3580
  %v3582 = vsel %vm3108, %v3509, 0.0
  %v3583 = vadd.f32 %v3581, %v3582
  %v3584 = vsel %vm3108, %v3510, 0.0
  %v3585 = vadd.f32 %v3583, %v3584
  %v3586 = vsel %vm3108, %v3511, 0.0
  %v3587 = vadd.f32 %v3585, %v3586
  %v3588 = vsel %vm3108, %v3512, 0.0
  %v3589 = vadd.f32 %v3587, %v3588
  %v3590 = vsel %vm3108, %v3513, 0.0
  %v3591 = vadd.f32 %v3589, %v3590
  %v3592 = vsel %vm3108, %v3514, 0.0
  %v3593 = vadd.f32 %v3591, %v3592
  %v3594 = vsel %vm3108, %v3515, 0.0
  %v3595 = vadd.f32 %v3593, %v3594
  %v3596 = vsel %vm3108, %v3516, 0.0
  %v3597 = vadd.f32 %v3595, %v3596
  %v3598 = vsel %vm3108, %v3517, 0.0
  %v3599 = vadd.f32 %v3597, %v3598
  %v3600 = vsel %vm3108, %v3518, 0.0
  %v3601 = vadd.f32 %v3599, %v3600
  %v3602 = vsel %vm3108, %v3519, 0.0
  %v3603 = vadd.f32 %v3601, %v3602
  %v3604 = vsel %vm3108, %v3520, 0.0
  %v3605 = vadd.f32 %v3603, %v3604
  %v3606 = vsel %vm3108, %v3521, 0.0
  %v3607 = vadd.f32 %v3605, %v3606
  %v3608 = vsel %vm3108, %v3522, 0.0
  %v3609 = vadd.f32 %v3607, %v3608
  %v3610 = vsel %vm3108, %v3523, 0.0
  %v3611 = vadd.f32 %v3609, %v3610
  %v3612 = vsel %vm3108, %v3524, 0.0
  %v3613 = vadd.f32 %v3611, %v3612
  %v3614 = vsel %vm3108, %v3525, 0.0
  %v3615 = vadd.f32 %v3613, %v3614
  %v3616 = vsel %vm3108, %v3526, 0.0
  %v3617 = vadd.f32 %v3615, %v3616
  %v3618 = vsel %vm3108, %v3527, 0.0
  %v3619 = vadd.f32 %v3617, %v3618
  %v3620 = vsel %vm3108, %v3528, 0.0
  %v3621 = vadd.f32 %v3619, %v3620
  %v3622 = vsel %vm3108, %v3529, 0.0
  %v3623 = vadd.f32 %v3621, %v3622
  %v3624 = vsel %vm3108, %v3530, 0.0
  %v3625 = vadd.f32 %v3623, %v3624
  %v3626 = vrot.slane %v3625, 4
  %v3627 = vadd.f32 %v3625, %v3626
  %v3628 = vrot.slane %v3627, 2
  %v3629 = vadd.f32 %v3627, %v3628
  %v3630 = vrot.slane %v3629, 1
  %v3631 = vadd.f32 %v3629, %v3630
  %v3632 = vsel %vm3108, %v3531, 0.0
  %v3633 = vsel %vm3108, %v3532, 0.0
  %v3634 = vadd.f32 %v3632, %v3633
  %v3635 = vsel %vm3108, %v3533, 0.0
  %v3636 = vadd.f32 %v3634, %v3635
  %v3637 = vsel %vm3108, %v3534, 0.0
  %v3638 = vadd.f32 %v3636, %v3637
  %v3639 = vsel %vm3108, %v3535, 0.0
  %v3640 = vadd.f32 %v3638, %v3639
  %v3641 = vsel %vm3108, %v3536, 0.0
  %v3642 = vadd.f32 %v3640, %v3641
  %v3643 = vsel %vm3108, %v3537, 0.0
  %v3644 = vadd.f32 %v3642, %v3643
  %v3645 = vsel %vm3108, %v3538, 0.0
  %v3646 = vadd.f32 %v3644, %v3645
  %v3647 = vsel %vm3108, %v3539, 0.0
  %v3648 = vadd.f32 %v3646, %v3647
  %v3649 = vsel %vm3108, %v3540, 0.0
  %v3650 = vadd.f32 %v3648, %v3649
  %v3651 = vsel %vm3108, %v3541, 0.0
  %v3652 = vadd.f32 %v3650, %v3651
  %v3653 = vsel %vm3108, %v3542, 0.0
  %v3654 = vadd.f32 %v3652, %v3653
  %v3655 = vsel %vm3108, %v3543, 0.0
  %v3656 = vadd.f32 %v3654, %v3655
  %v3657 = vsel %vm3108, %v3544, 0.0
  %v3658 = vadd.f32 %v3656, %v3657
  %v3659 = vsel %vm3108, %v3545, 0.0
  %v3660 = vadd.f32 %v3658, %v3659
  %v3661 = vsel %vm3108, %v3546, 0.0
  %v3662 = vadd.f32 %v3660, %v3661
  %v3663 = vsel %vm3108, %v3547, 0.0
  %v3664 = vadd.f32 %v3662, %v3663
  %v3665 = vsel %vm3108, %v3548, 0.0
  %v3666 = vadd.f32 %v3664, %v3665
  %v3667 = vsel %vm3108, %v3549, 0.0
  %v3668 = vadd.f32 %v3666, %v3667
  %v3669 = vsel %vm3108, %v3550, 0.0
  %v3670 = vadd.f32 %v3668, %v3669
  %v3671 = vsel %vm3108, %v3551, 0.0
  %v3672 = vadd.f32 %v3670, %v3671
  %v3673 = vsel %vm3108, %v3552, 0.0
  %v3674 = vadd.f32 %v3672, %v3673
  %v3675 = vsel %vm3108, %v3553, 0.0
  %v3676 = vadd.f32 %v3674, %v3675
  %v3677 = vsel %vm3108, %v3554, 0.0
  %v3678 = vadd.f32 %v3676, %v3677
  %v3679 = vsel %vm3108, %v3555, 0.0
  %v3680 = vadd.f32 %v3678, %v3679
  %v3681 = vsel %vm3108, %v3556, 0.0
  %v3682 = vadd.f32 %v3680, %v3681
  %v3683 = vsel %vm3108, %v3557, 0.0
  %v3684 = vadd.f32 %v3682, %v3683
  %v3685 = vsel %vm3108, %v3558, 0.0
  %v3686 = vadd.f32 %v3684, %v3685
  %v3687 = vsel %vm3108, %v3559, 0.0
  %v3688 = vadd.f32 %v3686, %v3687
  %v3689 = vsel %vm3108, %v3560, 0.0
  %v3690 = vadd.f32 %v3688, %v3689
  %v3691 = vsel %vm3108, %v3561, 0.0
  %v3692 = vadd.f32 %v3690, %v3691
  %v3693 = vsel %vm3108, %v3562, 0.0
  %v3694 = vadd.f32 %v3692, %v3693
  %v3695 = vrot.slane %v3694, 4
  %v3696 = vadd.f32 %v3694, %v3695
  %v3697 = vrot.slane %v3696, 2
  %v3698 = vadd.f32 %v3696, %v3697
  %v3699 = vrot.slane %v3698, 1
  %v3700 = vadd.f32 %v3698, %v3699
  %v3701 = vrcp.pop 256.0
  %v3702 = vmul.f32 256.0, %v3701
  %v3703 = vsub.f32 1.0, %v3702
  %v3704 = vmul.f32 %v3701, %v3703
  %v3705 = vadd.f32 %v3701, %v3704
  %vm3706 = vweird.f32 %v3701
  %v3707 = vsel %vm3706, %v3701, %v3705
  %v3708 = vmul.f32 %v3631, %v3707
  %v3709 = vmul.f32 %v3700, %v3707
  %v3710 = vpack.c.bf16 %v3708, %v3708
  %v3711 = vpack.c.bf16 %v3709, %v3709
  %v3712 = vld [vmem:[%s3] sm:$0xf]
  %v3713 = vld [vmem:[%s3 + $0x4] sm:$0xf]
  %v3714 = vld [vmem:[%s3 + $0x8] sm:$0xf]
  %v3715 = vld [vmem:[%s3 + $0xc] sm:$0xf]
  %v3716 = vld [vmem:[%s4] sm:$0x1]
  %v3718 = vperm.slane %v3716, 0
  %v3722 = vunpack.c.l.b16 %v3710
  %v3723 = vunpack.c.l.b16 %v3711
  %vm3724 = vcmask 1041409
  %v3725 = vsel %vm3724, %v3723, %v3722
  %v3726 = vpack.c.b16 %v3725, %v3725
  %v3731 = vunpack.c.l.b16 %v3712
  %v3732 = vunpack.c.l.b16 %v3713
  %v3733 = vunpack.c.l.b16 %v3714
  %v3734 = vunpack.c.l.b16 %v3715
  %v3735 = vpack.c.b16 %v3732, %v3731
  %v3736 = vpack.c.b16 %v3734, %v3733
  %v3740 = vsel %vm3108, %v3726, 0
  %3742 = vmatpush.bf16.msra.mxu0 0
  %3743 = vmatpush.bf16.msra.mxu0 0
  %3744 = vmatpush.bf16.msra.mxu0 0
  %3745 = vmatpush.bf16.msra.mxu0 0
  %3746 = vmatpush.bf16.msra.mxu0 0
  %3747 = vmatpush.bf16.msra.mxu0 0
  %3748 = vmatpush.bf16.msra.mxu0 %v3736
  %3749 = vmatpush.bf16.msra.mxu0 %v3735
  %3750 = vmatmul.bf16.gmra.mxu0 %v3740
  %v3751 = vpop.f32.mrf.mxu0
  %v3752 = vadd.f32 %v3718, %v3751
  %v3753 = vpop.f32.mrf.mxu0
  %3754 = vdwg.mxu0
  %v3755 = vmax.f32 %v3752, 0.0
  %v3756 = vpack.c.bf16 %v3755, %v3755
  %v3757 = vld [vmem:[%s5] sm:$0xf]
  %v3758 = vld [vmem:[%s5 + $0x4] sm:$0xf]
  %v3759 = vld [vmem:[%s5 + $0x8] sm:$0xf]
  %v3760 = vld [vmem:[%s5 + $0xc] sm:$0xf]
  %v3761 = vld [vmem:[%s5 + $0x10] sm:$0xf]
  %v3762 = vld [vmem:[%s5 + $0x14] sm:$0xf]
  %v3763 = vld [vmem:[%s5 + $0x18] sm:$0xf]
  %v3764 = vld [vmem:[%s5 + $0x1c] sm:$0xf]
  %v3765 = vld [vmem:[%s5 + $0x20] sm:$0xf]
  %v3766 = vld [vmem:[%s5 + $0x24] sm:$0xf]
  %v3767 = vld [vmem:[%s5 + $0x28] sm:$0xf]
  %v3768 = vld [vmem:[%s5 + $0x2c] sm:$0xf]
  %v3769 = vld [vmem:[%s6] sm:$0x1]
  %v3771 = vperm.slane %v3769, 0
  %v3785 = vunpack.c.l.b16 %v3757
  %v3786 = vunpack.c.l.b16 %v3758
  %v3787 = vunpack.c.l.b16 %v3759
  %v3788 = vunpack.c.l.b16 %v3760
  %v3789 = vunpack.c.l.b16 %v3761
  %v3790 = vunpack.c.l.b16 %v3762
  %v3791 = vunpack.c.l.b16 %v3763
  %v3792 = vunpack.c.l.b16 %v3764
  %v3793 = vunpack.c.l.b16 %v3765
  %v3794 = vunpack.c.l.b16 %v3766
  %v3795 = vunpack.c.l.b16 %v3767
  %v3796 = vunpack.c.l.b16 %v3768
  %v3797 = vpack.c.b16 %v3786, %v3785
  %v3798 = vpack.c.b16 %v3788, %v3787
  %v3799 = vpack.c.b16 %v3790, %v3789
  %v3800 = vpack.c.b16 %v3792, %v3791
  %v3801 = vpack.c.b16 %v3794, %v3793
  %v3802 = vpack.c.b16 %v3796, %v3795
  %vm3809 = vcmask 785408
  %v3811 = vsel %vm3809, %v3756, 0
  %3813 = vmatpush.bf16.msra.mxu0 0
  %3814 = vmatpush.bf16.msra.mxu0 0
  %3815 = vmatpush.bf16.msra.mxu0 %v3802
  %3816 = vmatpush.bf16.msra.mxu0 %v3801
  %3817 = vmatpush.bf16.msra.mxu0 %v3800
  %3818 = vmatpush.bf16.msra.mxu0 %v3799
  %3819 = vmatpush.bf16.msra.mxu0 %v3798
  %3820 = vmatpush.bf16.msra.mxu0 %v3797
  %3821 = vmatmul.bf16.gmra.mxu0 %v3811
  %v3822 = vpop.f32.mrf.mxu0
  %v3823 = vadd.f32 %v3771, %v3822
  %v3824 = vpop.f32.mrf.mxu0
  %3825 = vdwg.mxu0
  %v3828 = vsel %vm3724, %v3709, %v3708
  %3831 = vrot.lane.b32.xlu0 %v3755, 32
  %v3832 = vpop.permute.xlu0 %3831
  %v3834 = vsel %vm3108, %v3828, %v3832
  %v3835 = vsel %vm2978, %v3823, 0.0
  %v3838 = vrot.slane %v3835, 6
  %v3839 = vsel %vm3326, %v3834, %v3838
  %3841 = vst [vmem:[%s7] sm:$0xf] %v3839
  // Predicated region
  $region30: #{model_forward.1} parent=0 // pred_check
    _
  $region31: #{model_forward.1} parent=0 // pred_check_branch
    %3843 = sbr.rel (0) target = $region33
  $region32: #{model_forward.1} parent=0 // pred_region
    _
  $region33: #{model_forward.1} parent=0 // pred_fallthru
    _
  // Predicated region
  $region34: #{model_forward.1} parent=0 // pred_check
    _
  $region35: #{model_forward.1} parent=0 // pred_check_branch
    %3845 = sbr.rel (0) target = $region37
  $region36: #{model_forward.1} parent=0 // pred_region
    _
  $region37: #{model_forward.1} parent=0 // pred_fallthru
    _

</llo_original>
